<compile_context>
chip_gen: v7x
topology: tpu7x:2x2x1
jax: 0.10.0
libtpu: 0.0.40
codegen_flags: <defaults>
</compile_context>

<pallas_src>
import functools

import jax
import jax.numpy as jnp
from jax import lax
from jax.experimental import pallas as pl
from jax.experimental.pallas import tpu as pltpu

IN_DIM = 10        # network input width
OUT_DIM = 4        # network output width
FEAT_PAD = 16      # padded feature dim (>= widest layer 10, multiple of 8 sublanes)
N_LAYERS = 4
BIAS_COL = 16      # column of the packed param slab that holds the bias
SLAB_COLS = 32     # padded lane width of the param slab

# (block_b, 10) f32 input tiles pad to 128 lanes in VMEM -> 512 B/sample, so
# 16384 samples/tile = 8 MiB per buffer (16 MiB double-buffered).  Keep under
# the 32 MiB scoped-VMEM budget that is safe on v5e / v6e / v7x.
MAX_BLOCK_B = 16384

_MM = dict(preferred_element_type=jnp.float32, precision=lax.Precision.HIGHEST)


def mlp_kernel(x_ref, p_ref, o_ref):
    """x_ref: (block_b, 10)   p_ref: (4, 16, 32)   o_ref: (4, block_b)."""
    x = x_ref[...]                                    # natural (batch, feature) tile

    # ---- Layer 1: h = W1 . x^T + b1  -> (16, block_b) -------------------
    # Contract both minor dims (A . B^T form); Mosaic handles the on-chip
    # transpose of the batch operand, so the batch is lane-dense from here on
    # and no wrapper-side transpose pass over HBM is needed.
    w1 = p_ref[0, :, :IN_DIM]                         # (16, 10), rows 10..15 zero
    b1 = p_ref[0, :, BIAS_COL:BIAS_COL + 1]           # (16, 1)
    h = lax.dot_general(w1, x, (((1,), (1,)), ((), ())), **_MM) + b1
    h = jnp.tanh(h)                                   # 16 lane-dense rows

    # ---- Layer 2: (8, 16) weight slice; zero-padded cols 10..15 are exact --
    w2 = p_ref[1, :8, :FEAT_PAD]                      # (8, 16)
    b2 = p_ref[1, :8, BIAS_COL:BIAS_COL + 1]          # (8, 1)
    h = jnp.tanh(jnp.dot(w2, h, **_MM) + b2)          # (8, block_b)

    # ---- Layer 3 ----------------------------------------------------------
    w3 = p_ref[2, :8, :8]                             # (8, 8)
    b3 = p_ref[2, :8, BIAS_COL:BIAS_COL + 1]
    h = jnp.tanh(jnp.dot(w3, h, **_MM) + b3)          # (8, block_b)

    # ---- Layer 4 (no tanh); real weight is (4, 8), rows 4..7 zero ----------
    w4 = p_ref[3, :8, :8]                             # (8, 8)
    b4 = p_ref[3, :8, BIAS_COL:BIAS_COL + 1]
    h = jnp.dot(w4, h, **_MM) + b4                    # (8, block_b), rows 4..7 zero

    o_ref[...] = h[:OUT_DIM, :].astype(o_ref.dtype)   # lane-dense (4, block_b) store


def pack_params(params):
    """Pack PyTorch-layout (out,in) weights and (out,) biases into one padded slab."""
    slab = jnp.zeros((N_LAYERS, FEAT_PAD, SLAB_COLS), jnp.float32)
    for l, (w, b) in enumerate(params):
        out_d, in_d = w.shape
        slab = slab.at[l, :out_d, :in_d].set(w.astype(jnp.float32))
        slab = slab.at[l, :out_d, BIAS_COL].set(b.astype(jnp.float32))
    return slab


def _round_up(n, m):
    return ((n + m - 1) // m) * m


def _choose_tiling(batch, target_block):
    """Pick (block_b, padded_batch, n_steps): block_b a multiple of 128 that
    divides padded_batch exactly, capped for VMEM, with an even >=2-step grid
    whenever the batch allows (so v7x's second TensorCore is used)."""
    target = max(128, min(int(target_block), MAX_BLOCK_B))
    target = _round_up(target, 128)
    n_steps = max(1, -(-batch // target))             # ceil divide
    if n_steps == 1 and batch > 128:
        n_steps = 2                                   # give the 2nd TC something to do
    if n_steps > 1 and (n_steps % 2):
        n_steps += 1                                  # even split across 2 cores
    block_b = _round_up(-(-batch // n_steps), 128)
    return block_b, n_steps * block_b, n_steps


@functools.partial(jax.jit, static_argnames=("block_b",))
def mlp_forward(x, param_slab, *, block_b=MAX_BLOCK_B):
    """x: (B, 10) float32 -> (B, 4) float32."""
    B, F = x.shape
    assert F == IN_DIM
    bb, b_pad, n_steps = _choose_tiling(B, block_b)

    # Only the (rare) ragged-batch case pays a pad pass; no transpose pass ever.
    if b_pad != B:
        x = jnp.pad(x, ((0, b_pad - B), (0, 0)))

    out_t = pl.pallas_call(
        mlp_kernel,
        out_shape=jax.ShapeDtypeStruct((OUT_DIM, b_pad), jnp.float32),
        grid=(n_steps,),
        in_specs=[
            # Natural-layout input blocks: minor dim 10 == full array dim -> legal.
            pl.BlockSpec((bb, IN_DIM), lambda i: (i, 0)),
            # Single packed param slab, VMEM-resident across steps (constant map).
            pl.BlockSpec((N_LAYERS, FEAT_PAD, SLAB_COLS), lambda i: (0, 0, 0)),
        ],
        out_specs=pl.BlockSpec((OUT_DIM, bb), lambda i: (0, i)),
        compiler_params=pltpu.CompilerParams(
            dimension_semantics=("parallel",),
            vmem_limit_bytes=32 * 1024 * 1024,   # v5e default is 16 MiB; raise it
        ),
    )(x, param_slab)

    return out_t[:, :B].T                            # tiny (4, B) -> (B, 4) transpose


def init_linear_params(key, fan_in, fan_out):
    # torch.nn.Linear default init: U(-1/sqrt(fan_in), 1/sqrt(fan_in)),
    # weight stored PyTorch-style as (out, in), bias as (out,).
    kw, kb = jax.random.split(key)
    bound = 1.0 / float(fan_in) ** 0.5
    w = jax.random.uniform(kw, (fan_out, fan_in), jnp.float32, -bound, bound)
    b = jax.random.uniform(kb, (fan_out,), jnp.float32, -bound, bound)
    return w, b


def reference_forward(x, params):
    h = x
    for i, (w, b) in enumerate(params):
        h = h @ w.T + b                               # PyTorch Linear semantics
        if i < len(params) - 1:
            h = jnp.tanh(h)
    return h


if __name__ == "__main__":
    key = jax.random.PRNGKey(0)
    k_in, k1, k2, k3, k4 = jax.random.split(key, 5)

    B = 300   # deliberately not a multiple of 128: exercises padding + 2-step grid
    x = jax.random.normal(k_in, (B, 10), jnp.float32)

    params = (
        init_linear_params(k1, 10, 10),
        init_linear_params(k2, 10, 8),
        init_linear_params(k3, 8, 8),
        init_linear_params(k4, 8, 4),
    )
    slab = pack_params(params)

    out = mlp_forward(x, slab)          # chooser -> block_b=256, b_pad=512, grid=(2,)
    out = jax.block_until_ready(out)

    ref = reference_forward(x, params)
    assert out.shape == (B, 4)
    err = float(jnp.max(jnp.abs(out - ref)))
    assert jnp.allclose(out, ref, atol=1e-4, rtol=1e-4), err

    print("KERNEL_OK")
</pallas_src>

<mosaic_0001>
module attributes {stable_mosaic.version = 11 : i64} {
  func.func @mlp_kernel(%arg0: i32, %arg1: memref<256x10xf32, #tpu.memory_space<vmem>>, %arg2: memref<4x16x32xf32, #tpu.memory_space<vmem>>, %arg3: memref<4x256xf32, #tpu.memory_space<vmem>>) attributes {dimension_semantics = [#tpu.dimension_semantics<parallel>], iteration_bounds = array<i64: 2>, scalar_prefetch = 0 : i64, scratch_operands = 0 : i64, tpu.core_type = #tpu.core_type<tc>, window_params = [{transform_indices = @transform_0, window_bounds = array<i64: 256, 10>}, {pipeline_mode = #tpu.pipeline_mode<synchronous>, transform_indices = @transform_1, window_bounds = array<i64: 4, 16, 32>}, {transform_indices = @transform_2, window_bounds = array<i64: 4, 256>}]} {
    %c0 = arith.constant 0 : index
    %c0_0 = arith.constant 0 : index
    %0 = vector.load %arg1[%c0, %c0_0] : memref<256x10xf32, #tpu.memory_space<vmem>>, vector<256x10xf32>
    %c0_1 = arith.constant 0 : index
    %c0_2 = arith.constant 0 : index
    %c0_3 = arith.constant 0 : index
    %1 = vector.load %arg2[%c0_1, %c0_2, %c0_3] : memref<4x16x32xf32, #tpu.memory_space<vmem>>, vector<1x16x10xf32>
    %2 = vector.shape_cast %1 : vector<1x16x10xf32> to vector<16x10xf32>
    %c0_4 = arith.constant 0 : index
    %c0_5 = arith.constant 0 : index
    %c16 = arith.constant 16 : index
    %3 = vector.load %arg2[%c0_4, %c0_5, %c16] : memref<4x16x32xf32, #tpu.memory_space<vmem>>, vector<1x16x1xf32>
    %4 = vector.shape_cast %3 : vector<1x16x1xf32> to vector<16x1xf32>
    %cst = arith.constant dense<0.000000e+00> : vector<16x256xf32>
    %5 = tpu.matmul %2, %0, %cst {dimension_numbers = #tpu.dot_dimension_numbers<[1], [1], [0], [0], [0, 0, 1, 0], [], []>, precision = #tpu.contract_precision<fp32>} : vector<16x10xf32>, vector<256x10xf32>, vector<16x256xf32> -> vector<16x256xf32>
    %6 = vector.broadcast %4 : vector<16x1xf32> to vector<16x256xf32>
    %7 = arith.addf %5, %6 : vector<16x256xf32>
    %8 = math.tanh %7 : vector<16x256xf32>
    %c1 = arith.constant 1 : index
    %c0_6 = arith.constant 0 : index
    %c0_7 = arith.constant 0 : index
    %9 = vector.load %arg2[%c1, %c0_6, %c0_7] : memref<4x16x32xf32, #tpu.memory_space<vmem>>, vector<1x8x16xf32>
    %10 = vector.shape_cast %9 : vector<1x8x16xf32> to vector<8x16xf32>
    %c1_8 = arith.constant 1 : index
    %c0_9 = arith.constant 0 : index
    %c16_10 = arith.constant 16 : index
    %11 = vector.load %arg2[%c1_8, %c0_9, %c16_10] : memref<4x16x32xf32, #tpu.memory_space<vmem>>, vector<1x8x1xf32>
    %12 = vector.shape_cast %11 : vector<1x8x1xf32> to vector<8x1xf32>
    %cst_11 = arith.constant dense<0.000000e+00> : vector<8x256xf32>
    %13 = tpu.matmul %10, %8, %cst_11 {dimension_numbers = #tpu.dot_dimension_numbers<[1], [0], [0], [1], [0, 0, 1, 1], [], []>, precision = #tpu.contract_precision<fp32>} : vector<8x16xf32>, vector<16x256xf32>, vector<8x256xf32> -> vector<8x256xf32>
    %14 = vector.broadcast %12 : vector<8x1xf32> to vector<8x256xf32>
    %15 = arith.addf %13, %14 : vector<8x256xf32>
    %16 = math.tanh %15 : vector<8x256xf32>
    %c2 = arith.constant 2 : index
    %c0_12 = arith.constant 0 : index
    %c0_13 = arith.constant 0 : index
    %17 = vector.load %arg2[%c2, %c0_12, %c0_13] : memref<4x16x32xf32, #tpu.memory_space<vmem>>, vector<1x8x8xf32>
    %18 = vector.shape_cast %17 : vector<1x8x8xf32> to vector<8x8xf32>
    %c2_14 = arith.constant 2 : index
    %c0_15 = arith.constant 0 : index
    %c16_16 = arith.constant 16 : index
    %19 = vector.load %arg2[%c2_14, %c0_15, %c16_16] : memref<4x16x32xf32, #tpu.memory_space<vmem>>, vector<1x8x1xf32>
    %20 = vector.shape_cast %19 : vector<1x8x1xf32> to vector<8x1xf32>
    %cst_17 = arith.constant dense<0.000000e+00> : vector<8x256xf32>
    %21 = tpu.matmul %18, %16, %cst_17 {dimension_numbers = #tpu.dot_dimension_numbers<[1], [0], [0], [1], [0, 0, 1, 1], [], []>, precision = #tpu.contract_precision<fp32>} : vector<8x8xf32>, vector<8x256xf32>, vector<8x256xf32> -> vector<8x256xf32>
    %22 = vector.broadcast %20 : vector<8x1xf32> to vector<8x256xf32>
    %23 = arith.addf %21, %22 : vector<8x256xf32>
    %24 = math.tanh %23 : vector<8x256xf32>
    %c3 = arith.constant 3 : index
    %c0_18 = arith.constant 0 : index
    %c0_19 = arith.constant 0 : index
    %25 = vector.load %arg2[%c3, %c0_18, %c0_19] : memref<4x16x32xf32, #tpu.memory_space<vmem>>, vector<1x8x8xf32>
    %26 = vector.shape_cast %25 : vector<1x8x8xf32> to vector<8x8xf32>
    %c3_20 = arith.constant 3 : index
    %c0_21 = arith.constant 0 : index
    %c16_22 = arith.constant 16 : index
    %27 = vector.load %arg2[%c3_20, %c0_21, %c16_22] : memref<4x16x32xf32, #tpu.memory_space<vmem>>, vector<1x8x1xf32>
    %28 = vector.shape_cast %27 : vector<1x8x1xf32> to vector<8x1xf32>
    %cst_23 = arith.constant dense<0.000000e+00> : vector<8x256xf32>
    %29 = tpu.matmul %26, %24, %cst_23 {dimension_numbers = #tpu.dot_dimension_numbers<[1], [0], [0], [1], [0, 0, 1, 1], [], []>, precision = #tpu.contract_precision<fp32>} : vector<8x8xf32>, vector<8x256xf32>, vector<8x256xf32> -> vector<8x256xf32>
    %30 = vector.broadcast %28 : vector<8x1xf32> to vector<8x256xf32>
    %31 = arith.addf %29, %30 : vector<8x256xf32>
    %32 = vector.extract_strided_slice %31 {offsets = [0, 0], sizes = [4, 256], strides = [1, 1]} : vector<8x256xf32> to vector<4x256xf32>
    %c0_24 = arith.constant 0 : index
    %c0_25 = arith.constant 0 : index
    %33 = vector.load %arg3[%c0_24, %c0_25] : memref<4x256xf32, #tpu.memory_space<vmem>>, vector<4x256xf32>
    tpu.vector_store %arg3[%c0_24, %c0_25], %32 {strides = array<i32>} : memref<4x256xf32, #tpu.memory_space<vmem>>, vector<4x256xf32>,
    return
  }
  func.func @transform_0(%arg0: i32) -> (i32, i32) {
    %c0_i32 = arith.constant 0 : i32
    %c0_i32_0 = arith.constant 0 : i32
    return %arg0, %c0_i32 : i32, i32
  }
  func.func @transform_1(%arg0: i32) -> (i32, i32, i32) {
    %c0_i32 = arith.constant 0 : i32
    %c0_i32_0 = arith.constant 0 : i32
    %c0_i32_1 = arith.constant 0 : i32
    %c0_i32_2 = arith.constant 0 : i32
    return %c0_i32, %c0_i32_0, %c0_i32_1 : i32, i32, i32
  }
  func.func @transform_2(%arg0: i32) -> (i32, i32) {
    %c0_i32 = arith.constant 0 : i32
    %c0_i32_0 = arith.constant 0 : i32
    return %c0_i32, %arg0 : i32, i32
  }
}

</mosaic_0001>

<llo_original>
// kernel: mlp_forward.1
$region0: #{mlp_forward.1}
  #allocation0 [shape = 'u32[]', space=smem, size = 0x4, offset = 0x4, fixed_abs, tag = 'smem constant byte address 0x4 - core index']
  #allocation1 [shape = 'u32[144,128]{1,0:T(1,128)}', space=vmem, size = 0x12000, scoped, tag = 'internal scratch']
  %s0 = inlined_call_operand.vmem [shape: f32[512,10], index: 0, kind: input, shape index: {}]
  %s1 = inlined_call_operand.vmem [shape: f32[4,16,32], index: 1, kind: input, shape index: {}]
  %s2 = inlined_call_operand.vmem [shape: f32[4,512], index: 2, kind: output, shape index: {}]
  %s3 = sld [smem:[#allocation0]]
  $region41: #{mlp_forward.1} parent=0
    _
  %s5 = ssub.s32 1, %s3
  %s6 = scalar_select 0, %s5, %s3
  loop: start=0, step=1, limit=4
  $region2: #{mlp_forward.1} parent=0 // loop_pre_header
    _
  $region3: #{mlp_forward.1} parent=0 // loop_header
    %s8 = sphi 0, %s12
    %p9 = scmp.ge.s32.totalorder %s8, 4
    %s18 = sphi 0, %s20
    %s21 = sphi 0, %s18
    %s22 = sphi 0, %s21
    %s38 = sphi 0, %s22
    %s42 = sphi 0, %s42
    %s44 = sphi 0, %s42
    %s45 = sphi 0, %s44
    %s59 = sphi 0, %s45
    %s65 = sphi 0, %s67
    %s68 = sphi 0, %s65
    %s69 = sphi 0, %s68
    %s85 = sphi 0, %s69
  $region4: #{mlp_forward.1} parent=0 // loop_header_branch
    %11 = sbr.rel (%p9) target = $region8
  $region5: #{mlp_forward.1} parent=0 // loop_body
    %s13 = ssub.s32 %s8, 1
    %s14 = ssub.s32 %s8, 2
    %s15 = sadd.s32 %s8, 1
    %s16 = ssub.s32 %s8, %s15
    %p17 = scmp.eq.s32.totalorder %s16, 0
    %s19 = sadd.s32 %s18, 1
    %s20 = scalar_select %p17, %s18, %s19
    %p23 = pneg %p17
    %p24 = scmp.eq.s32.totalorder %s8, 1
    %p25 = por %p23, %p24
    %p26 = scmp.ne.s32.totalorder %s18, %s21
    %p27 = scmp.eq.s32.totalorder %s8, 0
    %p28 = por %p26, %p27
    %p29 = scmp.ne.s32.totalorder %s18, %s21
    %p30 = scmp.eq.s32.totalorder %s13, 1
    %p31 = por %p29, %p30
    %p32 = scmp.ne.s32.totalorder %s21, %s22
    %p33 = scmp.eq.s32.totalorder %s13, 0
    %p34 = por %p32, %p33
    %p35 = scmp.ne.s32.totalorder %s21, %s22
    %p36 = scmp.eq.s32.totalorder %s14, 1
    %p37 = por %p35, %p36
    %p39 = scmp.ne.s32.totalorder %s22, %s38
    %p40 = scmp.eq.s32.totalorder %s14, 0
    %p41 = por %p39, %p40
    %s43 = sadd.s32 %s42, 1
    %p46 = scmp.eq.s32.totalorder %s8, 1
    %p47 = scmp.ne.s32.totalorder %s42, %s44
    %p48 = scmp.eq.s32.totalorder %s8, 0
    %p49 = por %p47, %p48
    %p50 = scmp.ne.s32.totalorder %s42, %s44
    %p51 = scmp.eq.s32.totalorder %s13, 1
    %p52 = por %p50, %p51
    %p53 = scmp.ne.s32.totalorder %s44, %s45
    %p54 = scmp.eq.s32.totalorder %s13, 0
    %p55 = por %p53, %p54
    %p56 = scmp.ne.s32.totalorder %s44, %s45
    %p57 = scmp.eq.s32.totalorder %s14, 1
    %p58 = por %p56, %p57
    %p60 = scmp.ne.s32.totalorder %s45, %s59
    %p61 = scmp.eq.s32.totalorder %s14, 0
    %p62 = por %p60, %p61
    %s63 = ssub.s32 %s8, %s15
    %p64 = scmp.eq.s32.totalorder %s63, 0
    %s66 = sadd.s32 %s65, 1
    %s67 = scalar_select %p64, %s65, %s66
    %p70 = pneg %p64
    %p71 = scmp.eq.s32.totalorder %s8, 1
    %p72 = por %p70, %p71
    %p73 = scmp.ne.s32.totalorder %s65, %s68
    %p74 = scmp.eq.s32.totalorder %s8, 0
    %p75 = por %p73, %p74
    %p76 = scmp.ne.s32.totalorder %s65, %s68
    %p77 = scmp.eq.s32.totalorder %s13, 1
    %p78 = por %p76, %p77
    %p79 = scmp.ne.s32.totalorder %s68, %s69
    %p80 = scmp.eq.s32.totalorder %s13, 0
    %p81 = por %p79, %p80
    %p82 = scmp.ne.s32.totalorder %s68, %s69
    %p83 = scmp.eq.s32.totalorder %s14, 1
    %p84 = por %p82, %p83
    %p86 = scmp.ne.s32.totalorder %s69, %s85
    %p87 = scmp.eq.s32.totalorder %s14, 0
    %p88 = por %p86, %p87
    %p89 = scmp.le.s32.totalorder 1, %s8
    %p90 = scmp.lt.s32.totalorder %s8, 3
    %p91 = pnand %p89, %p90
    %p92 = pneg %p91
    // Predicated region
    $region9: #{mlp_forward.1} parent=5 // pred_check
      _
    $region10: #{mlp_forward.1} parent=5 // pred_check_branch
      %94 = sbr.rel (%p91) target = $region12
    $region11: #{mlp_forward.1} parent=5 // pred_region
      %s95 = ssub.s32 %s8, 1
      // Predicated region
      $region13: #{mlp_forward.1} parent=11 // pred_check
        %p96 = pneg %p55
      $region14: #{mlp_forward.1} parent=11 // pred_check_branch
        %98 = sbr.rel (%p96) target = $region16
      $region15: #{mlp_forward.1} parent=11 // pred_region
        _
      $region16: #{mlp_forward.1} parent=11 // pred_fallthru
        _
    $region12: #{mlp_forward.1} parent=5 // pred_fallthru
      _
    %p99 = scmp.lt.s32.totalorder %s8, 2
    // Predicated region
    $region17: #{mlp_forward.1} parent=5 // pred_check
      %p100 = pneg %p99
    $region18: #{mlp_forward.1} parent=5 // pred_check_branch
      %102 = sbr.rel (%p100) target = $region20
    $region19: #{mlp_forward.1} parent=5 // pred_region
      // Predicated region
      $region21: #{mlp_forward.1} parent=19 // pred_check
        %p103 = pneg %p28
      $region22: #{mlp_forward.1} parent=19 // pred_check_branch
        %105 = sbr.rel (%p103) target = $region24
      $region23: #{mlp_forward.1} parent=19 // pred_region
        %s106 = smul.u32 32, %s8
        %p107 = scmp.lt.s32.totalorder %s106, 63
        %s108 = scalar_select %p107, %s106, 63
        %s109 = smul.addr %s108, 8
        %s110 = scalar_lea.vmem %s0, %s109
        %s111 = smul.u32 32, %s8
      $region24: #{mlp_forward.1} parent=19 // pred_fallthru
        _
    $region20: #{mlp_forward.1} parent=5 // pred_fallthru
      _
    %p112 = scmp.le.s32.totalorder 1, %s8
    %p113 = scmp.lt.s32.totalorder %s8, 3
    %p114 = pnand %p112, %p113
    %p115 = pneg %p114
    // Predicated region
    $region25: #{mlp_forward.1} parent=5 // pred_check
      _
    $region26: #{mlp_forward.1} parent=5 // pred_check_branch
      %117 = sbr.rel (%p114) target = $region28
    $region27: #{mlp_forward.1} parent=5 // pred_region
      %s118 = ssub.s32 %s8, 1
      %s119 = smul.u32 32, %s13
      %p120 = scmp.lt.s32.totalorder %s119, 63
      %s121 = scalar_select %p120, %s119, 63
      %s122 = smul.addr %s121, 8
      %s123 = scalar_lea.vmem %s0, %s122
      %p124 = pneg %p34
      %p125 = pneg %p31
      %p126 = pneg %p55
      %p127 = pneg %p52
      %p128 = pneg %p81
      %p129 = pneg %p78
      %s130 = smul.u32 2, %s13
      %p131 = scmp.lt.s32.totalorder %s130, 3
      %s132 = scalar_select %p131, %s130, 3
      %s133 = smul.addr %s132, 4
      %s134 = scalar_lea.vmem %s2, %s133
      %s135 = smul.u32 32, %s13
      %p136 = scmp.lt.s32.totalorder %s135, 63
      %s137 = scalar_select %p136, %s135, 63
      %s138 = smul.addr %s137, 8
      %s139 = scalar_lea.vmem %s0, %s138
      %s140 = smul.u32 32, %s13
      %s141 = smul.u32 2, %s13
      %p142 = scmp.lt.s32.totalorder %s141, 3
      %s143 = scalar_select %p142, %s141, 3
      %s144 = smul.addr %s143, 4
      %s145 = scalar_lea.vmem %s2, %s144
      %s146 = smul.u32 2, %s13
      %v147 = vld [vmem:[%s139] sm:$0xff]
      %v148 = vld [vmem:[%s139 + $0x8] sm:$0xff]
      %v149 = vld [vmem:[%s139 + $0x10] sm:$0xff]
      %v150 = vld [vmem:[%s139 + $0x18] sm:$0xff]
      %v151 = vld [vmem:[%s139 + $0x20] sm:$0xff]
      %v152 = vld [vmem:[%s139 + $0x28] sm:$0xff]
      %v153 = vld [vmem:[%s139 + $0x30] sm:$0xff]
      %v154 = vld [vmem:[%s139 + $0x38] sm:$0xff]
      %v155 = vld [vmem:[%s139 + $0x40] sm:$0xff]
      %v156 = vld [vmem:[%s139 + $0x48] sm:$0xff]
      %v157 = vld [vmem:[%s139 + $0x50] sm:$0xff]
      %v158 = vld [vmem:[%s139 + $0x58] sm:$0xff]
      %v159 = vld [vmem:[%s139 + $0x60] sm:$0xff]
      %v160 = vld [vmem:[%s139 + $0x68] sm:$0xff]
      %v161 = vld [vmem:[%s139 + $0x70] sm:$0xff]
      %v162 = vld [vmem:[%s139 + $0x78] sm:$0xff]
      %v163 = vld [vmem:[%s139 + $0x80] sm:$0xff]
      %v164 = vld [vmem:[%s139 + $0x88] sm:$0xff]
      %v165 = vld [vmem:[%s139 + $0x90] sm:$0xff]
      %v166 = vld [vmem:[%s139 + $0x98] sm:$0xff]
      %v167 = vld [vmem:[%s139 + $0xa0] sm:$0xff]
      %v168 = vld [vmem:[%s139 + $0xa8] sm:$0xff]
      %v169 = vld [vmem:[%s139 + $0xb0] sm:$0xff]
      %v170 = vld [vmem:[%s139 + $0xb8] sm:$0xff]
      %v171 = vld [vmem:[%s139 + $0xc0] sm:$0xff]
      %v172 = vld [vmem:[%s139 + $0xc8] sm:$0xff]
      %v173 = vld [vmem:[%s139 + $0xd0] sm:$0xff]
      %v174 = vld [vmem:[%s139 + $0xd8] sm:$0xff]
      %v175 = vld [vmem:[%s139 + $0xe0] sm:$0xff]
      %v176 = vld [vmem:[%s139 + $0xe8] sm:$0xff]
      %v177 = vld [vmem:[%s139 + $0xf0] sm:$0xff]
      %v178 = vld [vmem:[%s139 + $0xf8] sm:$0xff]
      %v179 = vld [vmem:[%s1] sm:$0xff]
      %v180 = vld [vmem:[%s1 + $0x8] sm:$0xff]
      %182 = vset.pattern.permute.xlu0 16
      %183 = vperm.xlu0 %182, %v179
      %v184 = vpop.permute.xlu0 %183
      %187 = vset.pattern.permute.xlu0 16
      %188 = vperm.xlu0 %187, %v180
      %v189 = vpop.permute.xlu0 %188
      %vm191 = vcmask 80896
      %v192 = vsel %vm191, %v179, 0
      %v194 = vsel %vm191, %v180, 0
      %v197 = vsel %vm191, %v147, 0
      %v200 = vsel %vm191, %v148, 0
      %v203 = vsel %vm191, %v149, 0
      %v206 = vsel %vm191, %v150, 0
      %v209 = vsel %vm191, %v151, 0
      %v212 = vsel %vm191, %v152, 0
      %v215 = vsel %vm191, %v153, 0
      %v218 = vsel %vm191, %v154, 0
      %v221 = vsel %vm191, %v155, 0
      %v224 = vsel %vm191, %v156, 0
      %v227 = vsel %vm191, %v157, 0
      %v230 = vsel %vm191, %v158, 0
      %v233 = vsel %vm191, %v159, 0
      %v236 = vsel %vm191, %v160, 0
      %v239 = vsel %vm191, %v161, 0
      %v242 = vsel %vm191, %v162, 0
      %v245 = vsel %vm191, %v163, 0
      %v248 = vsel %vm191, %v164, 0
      %v251 = vsel %vm191, %v165, 0
      %v254 = vsel %vm191, %v166, 0
      %v257 = vsel %vm191, %v167, 0
      %v260 = vsel %vm191, %v168, 0
      %v263 = vsel %vm191, %v169, 0
      %v266 = vsel %vm191, %v170, 0
      %v269 = vsel %vm191, %v171, 0
      %v272 = vsel %vm191, %v172, 0
      %v275 = vsel %vm191, %v173, 0
      %v278 = vsel %vm191, %v174, 0
      %v281 = vsel %vm191, %v175, 0
      %v284 = vsel %vm191, %v176, 0
      %v287 = vsel %vm191, %v177, 0
      %v290 = vsel %vm191, %v178, 0
      %292 = vmatprep.subr.mxu0 0.0
      %v293 = vand.u32 %v197, 4294901760
      %294 = vmatpush1.xpose.msra.mxu0 %v293
      %295 = vmatprep.subr.mxu0 0.0
      %v296 = vand.u32 %v200, 4294901760
      %297 = vmatpush1.xpose.msra.mxu0 %v296
      %298 = vmatprep.subr.mxu0 0.0
      %v299 = vand.u32 %v203, 4294901760
      %300 = vmatpush1.xpose.msra.mxu0 %v299
      %301 = vmatprep.subr.mxu0 0.0
      %v302 = vand.u32 %v206, 4294901760
      %303 = vmatpush1.xpose.msra.mxu0 %v302
      %304 = vmatprep.subr.mxu0 0.0
      %v305 = vand.u32 %v209, 4294901760
      %306 = vmatpush1.xpose.msra.mxu0 %v305
      %307 = vmatprep.subr.mxu0 0.0
      %v308 = vand.u32 %v212, 4294901760
      %309 = vmatpush1.xpose.msra.mxu0 %v308
      %310 = vmatprep.subr.mxu0 0.0
      %v311 = vand.u32 %v215, 4294901760
      %312 = vmatpush1.xpose.msra.mxu0 %v311
      %313 = vmatprep.subr.mxu0 0.0
      %v314 = vand.u32 %v218, 4294901760
      %315 = vmatpush1.xpose.msra.mxu0 %v314
      %316 = vmatprep.subr.mxu0 0.0
      %v317 = vand.u32 %v221, 4294901760
      %318 = vmatpush1.xpose.msra.mxu0 %v317
      %319 = vmatprep.subr.mxu0 0.0
      %v320 = vand.u32 %v224, 4294901760
      %321 = vmatpush1.xpose.msra.mxu0 %v320
      %322 = vmatprep.subr.mxu0 0.0
      %v323 = vand.u32 %v227, 4294901760
      %324 = vmatpush1.xpose.msra.mxu0 %v323
      %325 = vmatprep.subr.mxu0 0.0
      %v326 = vand.u32 %v230, 4294901760
      %327 = vmatpush1.xpose.msra.mxu0 %v326
      %328 = vmatprep.subr.mxu0 0.0
      %v329 = vand.u32 %v233, 4294901760
      %330 = vmatpush1.xpose.msra.mxu0 %v329
      %331 = vmatprep.subr.mxu0 0.0
      %v332 = vand.u32 %v236, 4294901760
      %333 = vmatpush1.xpose.msra.mxu0 %v332
      %334 = vmatprep.subr.mxu0 0.0
      %v335 = vand.u32 %v239, 4294901760
      %336 = vmatpush1.xpose.msra.mxu0 %v335
      %337 = vmatprep.subr.mxu0 0.0
      %v338 = vand.u32 %v242, 4294901760
      %339 = vmatpush1.xpose.msra.mxu0 %v338
      %340 = vmatprep.subr.mxu0 0.0
      %v341 = vand.u32 %v245, 4294901760
      %342 = vmatpush1.xpose.msra.mxu0 %v341
      %343 = vmatprep.subr.mxu0 0.0
      %v344 = vand.u32 %v248, 4294901760
      %345 = vmatpush1.xpose.msra.mxu0 %v344
      %346 = vmatprep.subr.mxu0 0.0
      %v347 = vand.u32 %v251, 4294901760
      %348 = vmatpush1.xpose.msra.mxu0 %v347
      %349 = vmatprep.subr.mxu0 0.0
      %v350 = vand.u32 %v254, 4294901760
      %351 = vmatpush1.xpose.msra.mxu0 %v350
      %352 = vmatprep.subr.mxu0 0.0
      %v353 = vand.u32 %v257, 4294901760
      %354 = vmatpush1.xpose.msra.mxu0 %v353
      %355 = vmatprep.subr.mxu0 0.0
      %v356 = vand.u32 %v260, 4294901760
      %357 = vmatpush1.xpose.msra.mxu0 %v356
      %358 = vmatprep.subr.mxu0 0.0
      %v359 = vand.u32 %v263, 4294901760
      %360 = vmatpush1.xpose.msra.mxu0 %v359
      %361 = vmatprep.subr.mxu0 0.0
      %v362 = vand.u32 %v266, 4294901760
      %363 = vmatpush1.xpose.msra.mxu0 %v362
      %364 = vmatprep.subr.mxu0 0.0
      %v365 = vand.u32 %v269, 4294901760
      %366 = vmatpush1.xpose.msra.mxu0 %v365
      %367 = vmatprep.subr.mxu0 0.0
      %v368 = vand.u32 %v272, 4294901760
      %369 = vmatpush1.xpose.msra.mxu0 %v368
      %370 = vmatprep.subr.mxu0 0.0
      %v371 = vand.u32 %v275, 4294901760
      %372 = vmatpush1.xpose.msra.mxu0 %v371
      %373 = vmatprep.subr.mxu0 0.0
      %v374 = vand.u32 %v278, 4294901760
      %375 = vmatpush1.xpose.msra.mxu0 %v374
      %376 = vmatprep.subr.mxu0 0.0
      %v377 = vand.u32 %v281, 4294901760
      %378 = vmatpush1.xpose.msra.mxu0 %v377
      %379 = vmatprep.subr.mxu0 0.0
      %v380 = vand.u32 %v284, 4294901760
      %381 = vmatpush1.xpose.msra.mxu0 %v380
      %382 = vmatprep.subr.mxu0 0.0
      %v383 = vand.u32 %v287, 4294901760
      %384 = vmatpush1.xpose.msra.mxu0 %v383
      %385 = vmatprep.subr.mxu0 0.0
      %v386 = vand.u32 %v290, 4294901760
      %387 = vmatpush1.xpose.msra.mxu0 %v386
      %388 = vmatprep.mubr.f32.mxu0 0.0
      %v389 = vand.u32 %v192, 4294901760
      %v390 = vsub.f32 %v192, %v389
      %v391 = vand.u32 %v390, 4294901760
      %v392 = vsub.f32 %v390, %v391
      %v393 = vand.u32 %v392, 4294901760
      %394 = vmatmul.mubr.f32.gmra.mrb[0].mxu0 %v393
      %v395 = vpop.f32.mrb[0].mxu0
      %v396 = vadd.f32 %v184, %v395
      %v397 = vpop.f32.mrb[0].mxu0
      %v398 = vadd.f32 %v184, %v397
      %399 = vmatprep.mubr.f32.mxu0 0.0
      %v400 = vand.u32 %v194, 4294901760
      %v401 = vsub.f32 %v194, %v400
      %v402 = vand.u32 %v401, 4294901760
      %v403 = vsub.f32 %v401, %v402
      %v404 = vand.u32 %v403, 4294901760
      %405 = vmatmul.mubr.f32.gmra.mrb[0].mxu0 %v404
      %v406 = vpop.f32.mrb[0].mxu0
      %v407 = vadd.f32 %v189, %v406
      %v408 = vpop.f32.mrb[0].mxu0
      %v409 = vadd.f32 %v189, %v408
      %410 = vdwg.mxu0
      %411 = vmatprep.subr.mxu0 0.0
      %v412 = vand.u32 %v197, 4294901760
      %v413 = vsub.f32 %v197, %v412
      %v414 = vand.u32 %v413, 4294901760
      %v415 = vsub.f32 %v413, %v414
      %v416 = vand.u32 %v415, 4294901760
      %417 = vmatpush1.xpose.msra.mxu0 %v416
      %418 = vmatprep.subr.mxu0 0.0
      %v419 = vand.u32 %v200, 4294901760
      %v420 = vsub.f32 %v200, %v419
      %v421 = vand.u32 %v420, 4294901760
      %v422 = vsub.f32 %v420, %v421
      %v423 = vand.u32 %v422, 4294901760
      %424 = vmatpush1.xpose.msra.mxu0 %v423
      %425 = vmatprep.subr.mxu0 0.0
      %v426 = vand.u32 %v203, 4294901760
      %v427 = vsub.f32 %v203, %v426
      %v428 = vand.u32 %v427, 4294901760
      %v429 = vsub.f32 %v427, %v428
      %v430 = vand.u32 %v429, 4294901760
      %431 = vmatpush1.xpose.msra.mxu0 %v430
      %432 = vmatprep.subr.mxu0 0.0
      %v433 = vand.u32 %v206, 4294901760
      %v434 = vsub.f32 %v206, %v433
      %v435 = vand.u32 %v434, 4294901760
      %v436 = vsub.f32 %v434, %v435
      %v437 = vand.u32 %v436, 4294901760
      %438 = vmatpush1.xpose.msra.mxu0 %v437
      %439 = vmatprep.subr.mxu0 0.0
      %v440 = vand.u32 %v209, 4294901760
      %v441 = vsub.f32 %v209, %v440
      %v442 = vand.u32 %v441, 4294901760
      %v443 = vsub.f32 %v441, %v442
      %v444 = vand.u32 %v443, 4294901760
      %445 = vmatpush1.xpose.msra.mxu0 %v444
      %446 = vmatprep.subr.mxu0 0.0
      %v447 = vand.u32 %v212, 4294901760
      %v448 = vsub.f32 %v212, %v447
      %v449 = vand.u32 %v448, 4294901760
      %v450 = vsub.f32 %v448, %v449
      %v451 = vand.u32 %v450, 4294901760
      %452 = vmatpush1.xpose.msra.mxu0 %v451
      %453 = vmatprep.subr.mxu0 0.0
      %v454 = vand.u32 %v215, 4294901760
      %v455 = vsub.f32 %v215, %v454
      %v456 = vand.u32 %v455, 4294901760
      %v457 = vsub.f32 %v455, %v456
      %v458 = vand.u32 %v457, 4294901760
      %459 = vmatpush1.xpose.msra.mxu0 %v458
      %460 = vmatprep.subr.mxu0 0.0
      %v461 = vand.u32 %v218, 4294901760
      %v462 = vsub.f32 %v218, %v461
      %v463 = vand.u32 %v462, 4294901760
      %v464 = vsub.f32 %v462, %v463
      %v465 = vand.u32 %v464, 4294901760
      %466 = vmatpush1.xpose.msra.mxu0 %v465
      %467 = vmatprep.subr.mxu0 0.0
      %v468 = vand.u32 %v221, 4294901760
      %v469 = vsub.f32 %v221, %v468
      %v470 = vand.u32 %v469, 4294901760
      %v471 = vsub.f32 %v469, %v470
      %v472 = vand.u32 %v471, 4294901760
      %473 = vmatpush1.xpose.msra.mxu0 %v472
      %474 = vmatprep.subr.mxu0 0.0
      %v475 = vand.u32 %v224, 4294901760
      %v476 = vsub.f32 %v224, %v475
      %v477 = vand.u32 %v476, 4294901760
      %v478 = vsub.f32 %v476, %v477
      %v479 = vand.u32 %v478, 4294901760
      %480 = vmatpush1.xpose.msra.mxu0 %v479
      %481 = vmatprep.subr.mxu0 0.0
      %v482 = vand.u32 %v227, 4294901760
      %v483 = vsub.f32 %v227, %v482
      %v484 = vand.u32 %v483, 4294901760
      %v485 = vsub.f32 %v483, %v484
      %v486 = vand.u32 %v485, 4294901760
      %487 = vmatpush1.xpose.msra.mxu0 %v486
      %488 = vmatprep.subr.mxu0 0.0
      %v489 = vand.u32 %v230, 4294901760
      %v490 = vsub.f32 %v230, %v489
      %v491 = vand.u32 %v490, 4294901760
      %v492 = vsub.f32 %v490, %v491
      %v493 = vand.u32 %v492, 4294901760
      %494 = vmatpush1.xpose.msra.mxu0 %v493
      %495 = vmatprep.subr.mxu0 0.0
      %v496 = vand.u32 %v233, 4294901760
      %v497 = vsub.f32 %v233, %v496
      %v498 = vand.u32 %v497, 4294901760
      %v499 = vsub.f32 %v497, %v498
      %v500 = vand.u32 %v499, 4294901760
      %501 = vmatpush1.xpose.msra.mxu0 %v500
      %502 = vmatprep.subr.mxu0 0.0
      %v503 = vand.u32 %v236, 4294901760
      %v504 = vsub.f32 %v236, %v503
      %v505 = vand.u32 %v504, 4294901760
      %v506 = vsub.f32 %v504, %v505
      %v507 = vand.u32 %v506, 4294901760
      %508 = vmatpush1.xpose.msra.mxu0 %v507
      %509 = vmatprep.subr.mxu0 0.0
      %v510 = vand.u32 %v239, 4294901760
      %v511 = vsub.f32 %v239, %v510
      %v512 = vand.u32 %v511, 4294901760
      %v513 = vsub.f32 %v511, %v512
      %v514 = vand.u32 %v513, 4294901760
      %515 = vmatpush1.xpose.msra.mxu0 %v514
      %516 = vmatprep.subr.mxu0 0.0
      %v517 = vand.u32 %v242, 4294901760
      %v518 = vsub.f32 %v242, %v517
      %v519 = vand.u32 %v518, 4294901760
      %v520 = vsub.f32 %v518, %v519
      %v521 = vand.u32 %v520, 4294901760
      %522 = vmatpush1.xpose.msra.mxu0 %v521
      %523 = vmatprep.subr.mxu0 0.0
      %v524 = vand.u32 %v245, 4294901760
      %v525 = vsub.f32 %v245, %v524
      %v526 = vand.u32 %v525, 4294901760
      %v527 = vsub.f32 %v525, %v526
      %v528 = vand.u32 %v527, 4294901760
      %529 = vmatpush1.xpose.msra.mxu0 %v528
      %530 = vmatprep.subr.mxu0 0.0
      %v531 = vand.u32 %v248, 4294901760
      %v532 = vsub.f32 %v248, %v531
      %v533 = vand.u32 %v532, 4294901760
      %v534 = vsub.f32 %v532, %v533
      %v535 = vand.u32 %v534, 4294901760
      %536 = vmatpush1.xpose.msra.mxu0 %v535
      %537 = vmatprep.subr.mxu0 0.0
      %v538 = vand.u32 %v251, 4294901760
      %v539 = vsub.f32 %v251, %v538
      %v540 = vand.u32 %v539, 4294901760
      %v541 = vsub.f32 %v539, %v540
      %v542 = vand.u32 %v541, 4294901760
      %543 = vmatpush1.xpose.msra.mxu0 %v542
      %544 = vmatprep.subr.mxu0 0.0
      %v545 = vand.u32 %v254, 4294901760
      %v546 = vsub.f32 %v254, %v545
      %v547 = vand.u32 %v546, 4294901760
      %v548 = vsub.f32 %v546, %v547
      %v549 = vand.u32 %v548, 4294901760
      %550 = vmatpush1.xpose.msra.mxu0 %v549
      %551 = vmatprep.subr.mxu0 0.0
      %v552 = vand.u32 %v257, 4294901760
      %v553 = vsub.f32 %v257, %v552
      %v554 = vand.u32 %v553, 4294901760
      %v555 = vsub.f32 %v553, %v554
      %v556 = vand.u32 %v555, 4294901760
      %557 = vmatpush1.xpose.msra.mxu0 %v556
      %558 = vmatprep.subr.mxu0 0.0
      %v559 = vand.u32 %v260, 4294901760
      %v560 = vsub.f32 %v260, %v559
      %v561 = vand.u32 %v560, 4294901760
      %v562 = vsub.f32 %v560, %v561
      %v563 = vand.u32 %v562, 4294901760
      %564 = vmatpush1.xpose.msra.mxu0 %v563
      %565 = vmatprep.subr.mxu0 0.0
      %v566 = vand.u32 %v263, 4294901760
      %v567 = vsub.f32 %v263, %v566
      %v568 = vand.u32 %v567, 4294901760
      %v569 = vsub.f32 %v567, %v568
      %v570 = vand.u32 %v569, 4294901760
      %571 = vmatpush1.xpose.msra.mxu0 %v570
      %572 = vmatprep.subr.mxu0 0.0
      %v573 = vand.u32 %v266, 4294901760
      %v574 = vsub.f32 %v266, %v573
      %v575 = vand.u32 %v574, 4294901760
      %v576 = vsub.f32 %v574, %v575
      %v577 = vand.u32 %v576, 4294901760
      %578 = vmatpush1.xpose.msra.mxu0 %v577
      %579 = vmatprep.subr.mxu0 0.0
      %v580 = vand.u32 %v269, 4294901760
      %v581 = vsub.f32 %v269, %v580
      %v582 = vand.u32 %v581, 4294901760
      %v583 = vsub.f32 %v581, %v582
      %v584 = vand.u32 %v583, 4294901760
      %585 = vmatpush1.xpose.msra.mxu0 %v584
      %586 = vmatprep.subr.mxu0 0.0
      %v587 = vand.u32 %v272, 4294901760
      %v588 = vsub.f32 %v272, %v587
      %v589 = vand.u32 %v588, 4294901760
      %v590 = vsub.f32 %v588, %v589
      %v591 = vand.u32 %v590, 4294901760
      %592 = vmatpush1.xpose.msra.mxu0 %v591
      %593 = vmatprep.subr.mxu0 0.0
      %v594 = vand.u32 %v275, 4294901760
      %v595 = vsub.f32 %v275, %v594
      %v596 = vand.u32 %v595, 4294901760
      %v597 = vsub.f32 %v595, %v596
      %v598 = vand.u32 %v597, 4294901760
      %599 = vmatpush1.xpose.msra.mxu0 %v598
      %600 = vmatprep.subr.mxu0 0.0
      %v601 = vand.u32 %v278, 4294901760
      %v602 = vsub.f32 %v278, %v601
      %v603 = vand.u32 %v602, 4294901760
      %v604 = vsub.f32 %v602, %v603
      %v605 = vand.u32 %v604, 4294901760
      %606 = vmatpush1.xpose.msra.mxu0 %v605
      %607 = vmatprep.subr.mxu0 0.0
      %v608 = vand.u32 %v281, 4294901760
      %v609 = vsub.f32 %v281, %v608
      %v610 = vand.u32 %v609, 4294901760
      %v611 = vsub.f32 %v609, %v610
      %v612 = vand.u32 %v611, 4294901760
      %613 = vmatpush1.xpose.msra.mxu0 %v612
      %614 = vmatprep.subr.mxu0 0.0
      %v615 = vand.u32 %v284, 4294901760
      %v616 = vsub.f32 %v284, %v615
      %v617 = vand.u32 %v616, 4294901760
      %v618 = vsub.f32 %v616, %v617
      %v619 = vand.u32 %v618, 4294901760
      %620 = vmatpush1.xpose.msra.mxu0 %v619
      %621 = vmatprep.subr.mxu0 0.0
      %v622 = vand.u32 %v287, 4294901760
      %v623 = vsub.f32 %v287, %v622
      %v624 = vand.u32 %v623, 4294901760
      %v625 = vsub.f32 %v623, %v624
      %v626 = vand.u32 %v625, 4294901760
      %627 = vmatpush1.xpose.msra.mxu0 %v626
      %628 = vmatprep.subr.mxu0 0.0
      %v629 = vand.u32 %v290, 4294901760
      %v630 = vsub.f32 %v290, %v629
      %v631 = vand.u32 %v630, 4294901760
      %v632 = vsub.f32 %v630, %v631
      %v633 = vand.u32 %v632, 4294901760
      %634 = vmatpush1.xpose.msra.mxu0 %v633
      %635 = vmatprep.mubr.f32.mxu0 0.0
      %v636 = vand.u32 %v192, 4294901760
      %637 = vmatmul.mubr.f32.gmra.mrb[0].mxu0 %v636
      %v638 = vpop.f32.mrb[0].mxu0
      %v639 = vadd.f32 %v396, %v638
      %v640 = vpop.f32.mrb[0].mxu0
      %v641 = vadd.f32 %v398, %v640
      %642 = vmatprep.mubr.f32.mxu0 0.0
      %v643 = vand.u32 %v194, 4294901760
      %644 = vmatmul.mubr.f32.gmra.mrb[0].mxu0 %v643
      %v645 = vpop.f32.mrb[0].mxu0
      %v646 = vadd.f32 %v407, %v645
      %v647 = vpop.f32.mrb[0].mxu0
      %v648 = vadd.f32 %v409, %v647
      %649 = vdwg.mxu0
      %650 = vmatprep.subr.mxu0 0.0
      %v651 = vand.u32 %v197, 4294901760
      %v652 = vsub.f32 %v197, %v651
      %653 = vmatpush1.xpose.msra.mxu0 %v652
      %654 = vmatprep.subr.mxu0 0.0
      %v655 = vand.u32 %v200, 4294901760
      %v656 = vsub.f32 %v200, %v655
      %657 = vmatpush1.xpose.msra.mxu0 %v656
      %658 = vmatprep.subr.mxu0 0.0
      %v659 = vand.u32 %v203, 4294901760
      %v660 = vsub.f32 %v203, %v659
      %661 = vmatpush1.xpose.msra.mxu0 %v660
      %662 = vmatprep.subr.mxu0 0.0
      %v663 = vand.u32 %v206, 4294901760
      %v664 = vsub.f32 %v206, %v663
      %665 = vmatpush1.xpose.msra.mxu0 %v664
      %666 = vmatprep.subr.mxu0 0.0
      %v667 = vand.u32 %v209, 4294901760
      %v668 = vsub.f32 %v209, %v667
      %669 = vmatpush1.xpose.msra.mxu0 %v668
      %670 = vmatprep.subr.mxu0 0.0
      %v671 = vand.u32 %v212, 4294901760
      %v672 = vsub.f32 %v212, %v671
      %673 = vmatpush1.xpose.msra.mxu0 %v672
      %674 = vmatprep.subr.mxu0 0.0
      %v675 = vand.u32 %v215, 4294901760
      %v676 = vsub.f32 %v215, %v675
      %677 = vmatpush1.xpose.msra.mxu0 %v676
      %678 = vmatprep.subr.mxu0 0.0
      %v679 = vand.u32 %v218, 4294901760
      %v680 = vsub.f32 %v218, %v679
      %681 = vmatpush1.xpose.msra.mxu0 %v680
      %682 = vmatprep.subr.mxu0 0.0
      %v683 = vand.u32 %v221, 4294901760
      %v684 = vsub.f32 %v221, %v683
      %685 = vmatpush1.xpose.msra.mxu0 %v684
      %686 = vmatprep.subr.mxu0 0.0
      %v687 = vand.u32 %v224, 4294901760
      %v688 = vsub.f32 %v224, %v687
      %689 = vmatpush1.xpose.msra.mxu0 %v688
      %690 = vmatprep.subr.mxu0 0.0
      %v691 = vand.u32 %v227, 4294901760
      %v692 = vsub.f32 %v227, %v691
      %693 = vmatpush1.xpose.msra.mxu0 %v692
      %694 = vmatprep.subr.mxu0 0.0
      %v695 = vand.u32 %v230, 4294901760
      %v696 = vsub.f32 %v230, %v695
      %697 = vmatpush1.xpose.msra.mxu0 %v696
      %698 = vmatprep.subr.mxu0 0.0
      %v699 = vand.u32 %v233, 4294901760
      %v700 = vsub.f32 %v233, %v699
      %701 = vmatpush1.xpose.msra.mxu0 %v700
      %702 = vmatprep.subr.mxu0 0.0
      %v703 = vand.u32 %v236, 4294901760
      %v704 = vsub.f32 %v236, %v703
      %705 = vmatpush1.xpose.msra.mxu0 %v704
      %706 = vmatprep.subr.mxu0 0.0
      %v707 = vand.u32 %v239, 4294901760
      %v708 = vsub.f32 %v239, %v707
      %709 = vmatpush1.xpose.msra.mxu0 %v708
      %710 = vmatprep.subr.mxu0 0.0
      %v711 = vand.u32 %v242, 4294901760
      %v712 = vsub.f32 %v242, %v711
      %713 = vmatpush1.xpose.msra.mxu0 %v712
      %714 = vmatprep.subr.mxu0 0.0
      %v715 = vand.u32 %v245, 4294901760
      %v716 = vsub.f32 %v245, %v715
      %717 = vmatpush1.xpose.msra.mxu0 %v716
      %718 = vmatprep.subr.mxu0 0.0
      %v719 = vand.u32 %v248, 4294901760
      %v720 = vsub.f32 %v248, %v719
      %721 = vmatpush1.xpose.msra.mxu0 %v720
      %722 = vmatprep.subr.mxu0 0.0
      %v723 = vand.u32 %v251, 4294901760
      %v724 = vsub.f32 %v251, %v723
      %725 = vmatpush1.xpose.msra.mxu0 %v724
      %726 = vmatprep.subr.mxu0 0.0
      %v727 = vand.u32 %v254, 4294901760
      %v728 = vsub.f32 %v254, %v727
      %729 = vmatpush1.xpose.msra.mxu0 %v728
      %730 = vmatprep.subr.mxu0 0.0
      %v731 = vand.u32 %v257, 4294901760
      %v732 = vsub.f32 %v257, %v731
      %733 = vmatpush1.xpose.msra.mxu0 %v732
      %734 = vmatprep.subr.mxu0 0.0
      %v735 = vand.u32 %v260, 4294901760
      %v736 = vsub.f32 %v260, %v735
      %737 = vmatpush1.xpose.msra.mxu0 %v736
      %738 = vmatprep.subr.mxu0 0.0
      %v739 = vand.u32 %v263, 4294901760
      %v740 = vsub.f32 %v263, %v739
      %741 = vmatpush1.xpose.msra.mxu0 %v740
      %742 = vmatprep.subr.mxu0 0.0
      %v743 = vand.u32 %v266, 4294901760
      %v744 = vsub.f32 %v266, %v743
      %745 = vmatpush1.xpose.msra.mxu0 %v744
      %746 = vmatprep.subr.mxu0 0.0
      %v747 = vand.u32 %v269, 4294901760
      %v748 = vsub.f32 %v269, %v747
      %749 = vmatpush1.xpose.msra.mxu0 %v748
      %750 = vmatprep.subr.mxu0 0.0
      %v751 = vand.u32 %v272, 4294901760
      %v752 = vsub.f32 %v272, %v751
      %753 = vmatpush1.xpose.msra.mxu0 %v752
      %754 = vmatprep.subr.mxu0 0.0
      %v755 = vand.u32 %v275, 4294901760
      %v756 = vsub.f32 %v275, %v755
      %757 = vmatpush1.xpose.msra.mxu0 %v756
      %758 = vmatprep.subr.mxu0 0.0
      %v759 = vand.u32 %v278, 4294901760
      %v760 = vsub.f32 %v278, %v759
      %761 = vmatpush1.xpose.msra.mxu0 %v760
      %762 = vmatprep.subr.mxu0 0.0
      %v763 = vand.u32 %v281, 4294901760
      %v764 = vsub.f32 %v281, %v763
      %765 = vmatpush1.xpose.msra.mxu0 %v764
      %766 = vmatprep.subr.mxu0 0.0
      %v767 = vand.u32 %v284, 4294901760
      %v768 = vsub.f32 %v284, %v767
      %769 = vmatpush1.xpose.msra.mxu0 %v768
      %770 = vmatprep.subr.mxu0 0.0
      %v771 = vand.u32 %v287, 4294901760
      %v772 = vsub.f32 %v287, %v771
      %773 = vmatpush1.xpose.msra.mxu0 %v772
      %774 = vmatprep.subr.mxu0 0.0
      %v775 = vand.u32 %v290, 4294901760
      %v776 = vsub.f32 %v290, %v775
      %777 = vmatpush1.xpose.msra.mxu0 %v776
      %778 = vmatprep.mubr.f32.mxu0 0.0
      %v779 = vand.u32 %v192, 4294901760
      %v780 = vsub.f32 %v192, %v779
      %781 = vmatmul.mubr.f32.gmra.mrb[0].mxu0 %v780
      %v782 = vpop.f32.mrb[0].mxu0
      %v783 = vadd.f32 %v639, %v782
      %v784 = vpop.f32.mrb[0].mxu0
      %v785 = vadd.f32 %v641, %v784
      %786 = vmatprep.mubr.f32.mxu0 0.0
      %v787 = vand.u32 %v194, 4294901760
      %v788 = vsub.f32 %v194, %v787
      %789 = vmatmul.mubr.f32.gmra.mrb[0].mxu0 %v788
      %v790 = vpop.f32.mrb[0].mxu0
      %v791 = vadd.f32 %v646, %v790
      %v792 = vpop.f32.mrb[0].mxu0
      %v793 = vadd.f32 %v648, %v792
      %794 = vdwg.mxu0
      %795 = vmatprep.subr.mxu0 0.0
      %v796 = vand.u32 %v197, 4294901760
      %797 = vmatpush1.xpose.msra.mxu0 %v796
      %798 = vmatprep.subr.mxu0 0.0
      %v799 = vand.u32 %v200, 4294901760
      %800 = vmatpush1.xpose.msra.mxu0 %v799
      %801 = vmatprep.subr.mxu0 0.0
      %v802 = vand.u32 %v203, 4294901760
      %803 = vmatpush1.xpose.msra.mxu0 %v802
      %804 = vmatprep.subr.mxu0 0.0
      %v805 = vand.u32 %v206, 4294901760
      %806 = vmatpush1.xpose.msra.mxu0 %v805
      %807 = vmatprep.subr.mxu0 0.0
      %v808 = vand.u32 %v209, 4294901760
      %809 = vmatpush1.xpose.msra.mxu0 %v808
      %810 = vmatprep.subr.mxu0 0.0
      %v811 = vand.u32 %v212, 4294901760
      %812 = vmatpush1.xpose.msra.mxu0 %v811
      %813 = vmatprep.subr.mxu0 0.0
      %v814 = vand.u32 %v215, 4294901760
      %815 = vmatpush1.xpose.msra.mxu0 %v814
      %816 = vmatprep.subr.mxu0 0.0
      %v817 = vand.u32 %v218, 4294901760
      %818 = vmatpush1.xpose.msra.mxu0 %v817
      %819 = vmatprep.subr.mxu0 0.0
      %v820 = vand.u32 %v221, 4294901760
      %821 = vmatpush1.xpose.msra.mxu0 %v820
      %822 = vmatprep.subr.mxu0 0.0
      %v823 = vand.u32 %v224, 4294901760
      %824 = vmatpush1.xpose.msra.mxu0 %v823
      %825 = vmatprep.subr.mxu0 0.0
      %v826 = vand.u32 %v227, 4294901760
      %827 = vmatpush1.xpose.msra.mxu0 %v826
      %828 = vmatprep.subr.mxu0 0.0
      %v829 = vand.u32 %v230, 4294901760
      %830 = vmatpush1.xpose.msra.mxu0 %v829
      %831 = vmatprep.subr.mxu0 0.0
      %v832 = vand.u32 %v233, 4294901760
      %833 = vmatpush1.xpose.msra.mxu0 %v832
      %834 = vmatprep.subr.mxu0 0.0
      %v835 = vand.u32 %v236, 4294901760
      %836 = vmatpush1.xpose.msra.mxu0 %v835
      %837 = vmatprep.subr.mxu0 0.0
      %v838 = vand.u32 %v239, 4294901760
      %839 = vmatpush1.xpose.msra.mxu0 %v838
      %840 = vmatprep.subr.mxu0 0.0
      %v841 = vand.u32 %v242, 4294901760
      %842 = vmatpush1.xpose.msra.mxu0 %v841
      %843 = vmatprep.subr.mxu0 0.0
      %v844 = vand.u32 %v245, 4294901760
      %845 = vmatpush1.xpose.msra.mxu0 %v844
      %846 = vmatprep.subr.mxu0 0.0
      %v847 = vand.u32 %v248, 4294901760
      %848 = vmatpush1.xpose.msra.mxu0 %v847
      %849 = vmatprep.subr.mxu0 0.0
      %v850 = vand.u32 %v251, 4294901760
      %851 = vmatpush1.xpose.msra.mxu0 %v850
      %852 = vmatprep.subr.mxu0 0.0
      %v853 = vand.u32 %v254, 4294901760
      %854 = vmatpush1.xpose.msra.mxu0 %v853
      %855 = vmatprep.subr.mxu0 0.0
      %v856 = vand.u32 %v257, 4294901760
      %857 = vmatpush1.xpose.msra.mxu0 %v856
      %858 = vmatprep.subr.mxu0 0.0
      %v859 = vand.u32 %v260, 4294901760
      %860 = vmatpush1.xpose.msra.mxu0 %v859
      %861 = vmatprep.subr.mxu0 0.0
      %v862 = vand.u32 %v263, 4294901760
      %863 = vmatpush1.xpose.msra.mxu0 %v862
      %864 = vmatprep.subr.mxu0 0.0
      %v865 = vand.u32 %v266, 4294901760
      %866 = vmatpush1.xpose.msra.mxu0 %v865
      %867 = vmatprep.subr.mxu0 0.0
      %v868 = vand.u32 %v269, 4294901760
      %869 = vmatpush1.xpose.msra.mxu0 %v868
      %870 = vmatprep.subr.mxu0 0.0
      %v871 = vand.u32 %v272, 4294901760
      %872 = vmatpush1.xpose.msra.mxu0 %v871
      %873 = vmatprep.subr.mxu0 0.0
      %v874 = vand.u32 %v275, 4294901760
      %875 = vmatpush1.xpose.msra.mxu0 %v874
      %876 = vmatprep.subr.mxu0 0.0
      %v877 = vand.u32 %v278, 4294901760
      %878 = vmatpush1.xpose.msra.mxu0 %v877
      %879 = vmatprep.subr.mxu0 0.0
      %v880 = vand.u32 %v281, 4294901760
      %881 = vmatpush1.xpose.msra.mxu0 %v880
      %882 = vmatprep.subr.mxu0 0.0
      %v883 = vand.u32 %v284, 4294901760
      %884 = vmatpush1.xpose.msra.mxu0 %v883
      %885 = vmatprep.subr.mxu0 0.0
      %v886 = vand.u32 %v287, 4294901760
      %887 = vmatpush1.xpose.msra.mxu0 %v886
      %888 = vmatprep.subr.mxu0 0.0
      %v889 = vand.u32 %v290, 4294901760
      %890 = vmatpush1.xpose.msra.mxu0 %v889
      %891 = vmatprep.mubr.f32.mxu0 0.0
      %v892 = vand.u32 %v192, 4294901760
      %v893 = vsub.f32 %v192, %v892
      %v894 = vand.u32 %v893, 4294901760
      %895 = vmatmul.mubr.f32.gmra.mrb[0].mxu0 %v894
      %v896 = vpop.f32.mrb[0].mxu0
      %v897 = vadd.f32 %v783, %v896
      %v898 = vpop.f32.mrb[0].mxu0
      %v899 = vadd.f32 %v785, %v898
      %900 = vmatprep.mubr.f32.mxu0 0.0
      %v901 = vand.u32 %v194, 4294901760
      %v902 = vsub.f32 %v194, %v901
      %v903 = vand.u32 %v902, 4294901760
      %904 = vmatmul.mubr.f32.gmra.mrb[0].mxu0 %v903
      %v905 = vpop.f32.mrb[0].mxu0
      %v906 = vadd.f32 %v791, %v905
      %v907 = vpop.f32.mrb[0].mxu0
      %v908 = vadd.f32 %v793, %v907
      %909 = vdwg.mxu0
      %910 = vmatprep.subr.mxu0 0.0
      %v911 = vand.u32 %v197, 4294901760
      %v912 = vsub.f32 %v197, %v911
      %v913 = vand.u32 %v912, 4294901760
      %914 = vmatpush1.xpose.msra.mxu0 %v913
      %915 = vmatprep.subr.mxu0 0.0
      %v916 = vand.u32 %v200, 4294901760
      %v917 = vsub.f32 %v200, %v916
      %v918 = vand.u32 %v917, 4294901760
      %919 = vmatpush1.xpose.msra.mxu0 %v918
      %920 = vmatprep.subr.mxu0 0.0
      %v921 = vand.u32 %v203, 4294901760
      %v922 = vsub.f32 %v203, %v921
      %v923 = vand.u32 %v922, 4294901760
      %924 = vmatpush1.xpose.msra.mxu0 %v923
      %925 = vmatprep.subr.mxu0 0.0
      %v926 = vand.u32 %v206, 4294901760
      %v927 = vsub.f32 %v206, %v926
      %v928 = vand.u32 %v927, 4294901760
      %929 = vmatpush1.xpose.msra.mxu0 %v928
      %930 = vmatprep.subr.mxu0 0.0
      %v931 = vand.u32 %v209, 4294901760
      %v932 = vsub.f32 %v209, %v931
      %v933 = vand.u32 %v932, 4294901760
      %934 = vmatpush1.xpose.msra.mxu0 %v933
      %935 = vmatprep.subr.mxu0 0.0
      %v936 = vand.u32 %v212, 4294901760
      %v937 = vsub.f32 %v212, %v936
      %v938 = vand.u32 %v937, 4294901760
      %939 = vmatpush1.xpose.msra.mxu0 %v938
      %940 = vmatprep.subr.mxu0 0.0
      %v941 = vand.u32 %v215, 4294901760
      %v942 = vsub.f32 %v215, %v941
      %v943 = vand.u32 %v942, 4294901760
      %944 = vmatpush1.xpose.msra.mxu0 %v943
      %945 = vmatprep.subr.mxu0 0.0
      %v946 = vand.u32 %v218, 4294901760
      %v947 = vsub.f32 %v218, %v946
      %v948 = vand.u32 %v947, 4294901760
      %949 = vmatpush1.xpose.msra.mxu0 %v948
      %950 = vmatprep.subr.mxu0 0.0
      %v951 = vand.u32 %v221, 4294901760
      %v952 = vsub.f32 %v221, %v951
      %v953 = vand.u32 %v952, 4294901760
      %954 = vmatpush1.xpose.msra.mxu0 %v953
      %955 = vmatprep.subr.mxu0 0.0
      %v956 = vand.u32 %v224, 4294901760
      %v957 = vsub.f32 %v224, %v956
      %v958 = vand.u32 %v957, 4294901760
      %959 = vmatpush1.xpose.msra.mxu0 %v958
      %960 = vmatprep.subr.mxu0 0.0
      %v961 = vand.u32 %v227, 4294901760
      %v962 = vsub.f32 %v227, %v961
      %v963 = vand.u32 %v962, 4294901760
      %964 = vmatpush1.xpose.msra.mxu0 %v963
      %965 = vmatprep.subr.mxu0 0.0
      %v966 = vand.u32 %v230, 4294901760
      %v967 = vsub.f32 %v230, %v966
      %v968 = vand.u32 %v967, 4294901760
      %969 = vmatpush1.xpose.msra.mxu0 %v968
      %970 = vmatprep.subr.mxu0 0.0
      %v971 = vand.u32 %v233, 4294901760
      %v972 = vsub.f32 %v233, %v971
      %v973 = vand.u32 %v972, 4294901760
      %974 = vmatpush1.xpose.msra.mxu0 %v973
      %975 = vmatprep.subr.mxu0 0.0
      %v976 = vand.u32 %v236, 4294901760
      %v977 = vsub.f32 %v236, %v976
      %v978 = vand.u32 %v977, 4294901760
      %979 = vmatpush1.xpose.msra.mxu0 %v978
      %980 = vmatprep.subr.mxu0 0.0
      %v981 = vand.u32 %v239, 4294901760
      %v982 = vsub.f32 %v239, %v981
      %v983 = vand.u32 %v982, 4294901760
      %984 = vmatpush1.xpose.msra.mxu0 %v983
      %985 = vmatprep.subr.mxu0 0.0
      %v986 = vand.u32 %v242, 4294901760
      %v987 = vsub.f32 %v242, %v986
      %v988 = vand.u32 %v987, 4294901760
      %989 = vmatpush1.xpose.msra.mxu0 %v988
      %990 = vmatprep.subr.mxu0 0.0
      %v991 = vand.u32 %v245, 4294901760
      %v992 = vsub.f32 %v245, %v991
      %v993 = vand.u32 %v992, 4294901760
      %994 = vmatpush1.xpose.msra.mxu0 %v993
      %995 = vmatprep.subr.mxu0 0.0
      %v996 = vand.u32 %v248, 4294901760
      %v997 = vsub.f32 %v248, %v996
      %v998 = vand.u32 %v997, 4294901760
      %999 = vmatpush1.xpose.msra.mxu0 %v998
      %1000 = vmatprep.subr.mxu0 0.0
      %v1001 = vand.u32 %v251, 4294901760
      %v1002 = vsub.f32 %v251, %v1001
      %v1003 = vand.u32 %v1002, 4294901760
      %1004 = vmatpush1.xpose.msra.mxu0 %v1003
      %1005 = vmatprep.subr.mxu0 0.0
      %v1006 = vand.u32 %v254, 4294901760
      %v1007 = vsub.f32 %v254, %v1006
      %v1008 = vand.u32 %v1007, 4294901760
      %1009 = vmatpush1.xpose.msra.mxu0 %v1008
      %1010 = vmatprep.subr.mxu0 0.0
      %v1011 = vand.u32 %v257, 4294901760
      %v1012 = vsub.f32 %v257, %v1011
      %v1013 = vand.u32 %v1012, 4294901760
      %1014 = vmatpush1.xpose.msra.mxu0 %v1013
      %1015 = vmatprep.subr.mxu0 0.0
      %v1016 = vand.u32 %v260, 4294901760
      %v1017 = vsub.f32 %v260, %v1016
      %v1018 = vand.u32 %v1017, 4294901760
      %1019 = vmatpush1.xpose.msra.mxu0 %v1018
      %1020 = vmatprep.subr.mxu0 0.0
      %v1021 = vand.u32 %v263, 4294901760
      %v1022 = vsub.f32 %v263, %v1021
      %v1023 = vand.u32 %v1022, 4294901760
      %1024 = vmatpush1.xpose.msra.mxu0 %v1023
      %1025 = vmatprep.subr.mxu0 0.0
      %v1026 = vand.u32 %v266, 4294901760
      %v1027 = vsub.f32 %v266, %v1026
      %v1028 = vand.u32 %v1027, 4294901760
      %1029 = vmatpush1.xpose.msra.mxu0 %v1028
      %1030 = vmatprep.subr.mxu0 0.0
      %v1031 = vand.u32 %v269, 4294901760
      %v1032 = vsub.f32 %v269, %v1031
      %v1033 = vand.u32 %v1032, 4294901760
      %1034 = vmatpush1.xpose.msra.mxu0 %v1033
      %1035 = vmatprep.subr.mxu0 0.0
      %v1036 = vand.u32 %v272, 4294901760
      %v1037 = vsub.f32 %v272, %v1036
      %v1038 = vand.u32 %v1037, 4294901760
      %1039 = vmatpush1.xpose.msra.mxu0 %v1038
      %1040 = vmatprep.subr.mxu0 0.0
      %v1041 = vand.u32 %v275, 4294901760
      %v1042 = vsub.f32 %v275, %v1041
      %v1043 = vand.u32 %v1042, 4294901760
      %1044 = vmatpush1.xpose.msra.mxu0 %v1043
      %1045 = vmatprep.subr.mxu0 0.0
      %v1046 = vand.u32 %v278, 4294901760
      %v1047 = vsub.f32 %v278, %v1046
      %v1048 = vand.u32 %v1047, 4294901760
      %1049 = vmatpush1.xpose.msra.mxu0 %v1048
      %1050 = vmatprep.subr.mxu0 0.0
      %v1051 = vand.u32 %v281, 4294901760
      %v1052 = vsub.f32 %v281, %v1051
      %v1053 = vand.u32 %v1052, 4294901760
      %1054 = vmatpush1.xpose.msra.mxu0 %v1053
      %1055 = vmatprep.subr.mxu0 0.0
      %v1056 = vand.u32 %v284, 4294901760
      %v1057 = vsub.f32 %v284, %v1056
      %v1058 = vand.u32 %v1057, 4294901760
      %1059 = vmatpush1.xpose.msra.mxu0 %v1058
      %1060 = vmatprep.subr.mxu0 0.0
      %v1061 = vand.u32 %v287, 4294901760
      %v1062 = vsub.f32 %v287, %v1061
      %v1063 = vand.u32 %v1062, 4294901760
      %1064 = vmatpush1.xpose.msra.mxu0 %v1063
      %1065 = vmatprep.subr.mxu0 0.0
      %v1066 = vand.u32 %v290, 4294901760
      %v1067 = vsub.f32 %v290, %v1066
      %v1068 = vand.u32 %v1067, 4294901760
      %1069 = vmatpush1.xpose.msra.mxu0 %v1068
      %1070 = vmatprep.mubr.f32.mxu0 0.0
      %v1071 = vand.u32 %v192, 4294901760
      %1072 = vmatmul.mubr.f32.gmra.mrb[0].mxu0 %v1071
      %v1073 = vpop.f32.mrb[0].mxu0
      %v1074 = vadd.f32 %v897, %v1073
      %v1075 = vpop.f32.mrb[0].mxu0
      %v1076 = vadd.f32 %v899, %v1075
      %1077 = vmatprep.mubr.f32.mxu0 0.0
      %v1078 = vand.u32 %v194, 4294901760
      %1079 = vmatmul.mubr.f32.gmra.mrb[0].mxu0 %v1078
      %v1080 = vpop.f32.mrb[0].mxu0
      %v1081 = vadd.f32 %v906, %v1080
      %v1082 = vpop.f32.mrb[0].mxu0
      %v1083 = vadd.f32 %v908, %v1082
      %1084 = vdwg.mxu0
      %1085 = vmatprep.subr.mxu0 0.0
      %v1086 = vand.u32 %v197, 4294901760
      %1087 = vmatpush1.xpose.msra.mxu0 %v1086
      %1088 = vmatprep.subr.mxu0 0.0
      %v1089 = vand.u32 %v200, 4294901760
      %1090 = vmatpush1.xpose.msra.mxu0 %v1089
      %1091 = vmatprep.subr.mxu0 0.0
      %v1092 = vand.u32 %v203, 4294901760
      %1093 = vmatpush1.xpose.msra.mxu0 %v1092
      %1094 = vmatprep.subr.mxu0 0.0
      %v1095 = vand.u32 %v206, 4294901760
      %1096 = vmatpush1.xpose.msra.mxu0 %v1095
      %1097 = vmatprep.subr.mxu0 0.0
      %v1098 = vand.u32 %v209, 4294901760
      %1099 = vmatpush1.xpose.msra.mxu0 %v1098
      %1100 = vmatprep.subr.mxu0 0.0
      %v1101 = vand.u32 %v212, 4294901760
      %1102 = vmatpush1.xpose.msra.mxu0 %v1101
      %1103 = vmatprep.subr.mxu0 0.0
      %v1104 = vand.u32 %v215, 4294901760
      %1105 = vmatpush1.xpose.msra.mxu0 %v1104
      %1106 = vmatprep.subr.mxu0 0.0
      %v1107 = vand.u32 %v218, 4294901760
      %1108 = vmatpush1.xpose.msra.mxu0 %v1107
      %1109 = vmatprep.subr.mxu0 0.0
      %v1110 = vand.u32 %v221, 4294901760
      %1111 = vmatpush1.xpose.msra.mxu0 %v1110
      %1112 = vmatprep.subr.mxu0 0.0
      %v1113 = vand.u32 %v224, 4294901760
      %1114 = vmatpush1.xpose.msra.mxu0 %v1113
      %1115 = vmatprep.subr.mxu0 0.0
      %v1116 = vand.u32 %v227, 4294901760
      %1117 = vmatpush1.xpose.msra.mxu0 %v1116
      %1118 = vmatprep.subr.mxu0 0.0
      %v1119 = vand.u32 %v230, 4294901760
      %1120 = vmatpush1.xpose.msra.mxu0 %v1119
      %1121 = vmatprep.subr.mxu0 0.0
      %v1122 = vand.u32 %v233, 4294901760
      %1123 = vmatpush1.xpose.msra.mxu0 %v1122
      %1124 = vmatprep.subr.mxu0 0.0
      %v1125 = vand.u32 %v236, 4294901760
      %1126 = vmatpush1.xpose.msra.mxu0 %v1125
      %1127 = vmatprep.subr.mxu0 0.0
      %v1128 = vand.u32 %v239, 4294901760
      %1129 = vmatpush1.xpose.msra.mxu0 %v1128
      %1130 = vmatprep.subr.mxu0 0.0
      %v1131 = vand.u32 %v242, 4294901760
      %1132 = vmatpush1.xpose.msra.mxu0 %v1131
      %1133 = vmatprep.subr.mxu0 0.0
      %v1134 = vand.u32 %v245, 4294901760
      %1135 = vmatpush1.xpose.msra.mxu0 %v1134
      %1136 = vmatprep.subr.mxu0 0.0
      %v1137 = vand.u32 %v248, 4294901760
      %1138 = vmatpush1.xpose.msra.mxu0 %v1137
      %1139 = vmatprep.subr.mxu0 0.0
      %v1140 = vand.u32 %v251, 4294901760
      %1141 = vmatpush1.xpose.msra.mxu0 %v1140
      %1142 = vmatprep.subr.mxu0 0.0
      %v1143 = vand.u32 %v254, 4294901760
      %1144 = vmatpush1.xpose.msra.mxu0 %v1143
      %1145 = vmatprep.subr.mxu0 0.0
      %v1146 = vand.u32 %v257, 4294901760
      %1147 = vmatpush1.xpose.msra.mxu0 %v1146
      %1148 = vmatprep.subr.mxu0 0.0
      %v1149 = vand.u32 %v260, 4294901760
      %1150 = vmatpush1.xpose.msra.mxu0 %v1149
      %1151 = vmatprep.subr.mxu0 0.0
      %v1152 = vand.u32 %v263, 4294901760
      %1153 = vmatpush1.xpose.msra.mxu0 %v1152
      %1154 = vmatprep.subr.mxu0 0.0
      %v1155 = vand.u32 %v266, 4294901760
      %1156 = vmatpush1.xpose.msra.mxu0 %v1155
      %1157 = vmatprep.subr.mxu0 0.0
      %v1158 = vand.u32 %v269, 4294901760
      %1159 = vmatpush1.xpose.msra.mxu0 %v1158
      %1160 = vmatprep.subr.mxu0 0.0
      %v1161 = vand.u32 %v272, 4294901760
      %1162 = vmatpush1.xpose.msra.mxu0 %v1161
      %1163 = vmatprep.subr.mxu0 0.0
      %v1164 = vand.u32 %v275, 4294901760
      %1165 = vmatpush1.xpose.msra.mxu0 %v1164
      %1166 = vmatprep.subr.mxu0 0.0
      %v1167 = vand.u32 %v278, 4294901760
      %1168 = vmatpush1.xpose.msra.mxu0 %v1167
      %1169 = vmatprep.subr.mxu0 0.0
      %v1170 = vand.u32 %v281, 4294901760
      %1171 = vmatpush1.xpose.msra.mxu0 %v1170
      %1172 = vmatprep.subr.mxu0 0.0
      %v1173 = vand.u32 %v284, 4294901760
      %1174 = vmatpush1.xpose.msra.mxu0 %v1173
      %1175 = vmatprep.subr.mxu0 0.0
      %v1176 = vand.u32 %v287, 4294901760
      %1177 = vmatpush1.xpose.msra.mxu0 %v1176
      %1178 = vmatprep.subr.mxu0 0.0
      %v1179 = vand.u32 %v290, 4294901760
      %1180 = vmatpush1.xpose.msra.mxu0 %v1179
      %1181 = vmatprep.mubr.f32.mxu0 0.0
      %v1182 = vand.u32 %v192, 4294901760
      %1183 = vmatmul.mubr.f32.gmra.mrb[0].mxu0 %v1182
      %v1184 = vpop.f32.mrb[0].mxu0
      %v1185 = vadd.f32 %v1074, %v1184
      %v1186 = vpop.f32.mrb[0].mxu0
      %v1187 = vadd.f32 %v1076, %v1186
      %1188 = vmatprep.mubr.f32.mxu0 0.0
      %v1189 = vand.u32 %v194, 4294901760
      %1190 = vmatmul.mubr.f32.gmra.mrb[0].mxu0 %v1189
      %v1191 = vpop.f32.mrb[0].mxu0
      %v1192 = vadd.f32 %v1081, %v1191
      %v1193 = vpop.f32.mrb[0].mxu0
      %v1194 = vadd.f32 %v1083, %v1193
      %1195 = vdwg.mxu0
      %v1196 = vtanh.pop %v1185
      %v1197 = vtanh.pop %v1187
      %v1198 = vtanh.pop %v1192
      %v1199 = vtanh.pop %v1194
      %s1200 = scalar_lea.vmem %s1, 16
      %v1201 = vld [vmem:[%s1200] sm:$0xff]
      %1203 = vset.pattern.permute.xlu0 16
      %1204 = vperm.xlu0 %1203, %v1201
      %v1205 = vpop.permute.xlu0 %1204
      %vm1207 = vcmask 130048
      %v1208 = vsel %vm1207, %v1201, 0
      %v1210 = vand.u32 %v1197, 4294901760
      %1211 = vmatprep.subr.mxu0 %v1210
      %v1212 = vand.u32 %v1196, 4294901760
      %1213 = vmatpush1.msra.mxu0 %v1212
      %v1214 = vand.u32 %v1199, 4294901760
      %1215 = vmatprep.subr.mxu0 %v1214
      %v1216 = vand.u32 %v1198, 4294901760
      %1217 = vmatpush1.msra.mxu0 %v1216
      %1218 = vmatprep.subr.mxu0 0.0
      %1219 = vmatpush1.msra.mxu0 0.0
      %1220 = vmatprep.subr.mxu0 0.0
      %1221 = vmatpush1.msra.mxu0 0.0
      %1222 = vmatprep.subr.mxu0 0.0
      %1223 = vmatpush1.msra.mxu0 0.0
      %1224 = vmatprep.subr.mxu0 0.0
      %1225 = vmatpush1.msra.mxu0 0.0
      %1226 = vmatprep.subr.mxu0 0.0
      %1227 = vmatpush1.msra.mxu0 0.0
      %1228 = vmatprep.subr.mxu0 0.0
      %1229 = vmatpush1.msra.mxu0 0.0
      %1230 = vmatprep.subr.mxu0 0.0
      %1231 = vmatpush1.msra.mxu0 0.0
      %1232 = vmatprep.subr.mxu0 0.0
      %1233 = vmatpush1.msra.mxu0 0.0
      %1234 = vmatprep.subr.mxu0 0.0
      %1235 = vmatpush1.msra.mxu0 0.0
      %1236 = vmatprep.subr.mxu0 0.0
      %1237 = vmatpush1.msra.mxu0 0.0
      %1238 = vmatprep.subr.mxu0 0.0
      %1239 = vmatpush1.msra.mxu0 0.0
      %1240 = vmatprep.subr.mxu0 0.0
      %1241 = vmatpush1.msra.mxu0 0.0
      %1242 = vmatprep.subr.mxu0 0.0
      %1243 = vmatpush1.msra.mxu0 0.0
      %1244 = vmatprep.subr.mxu0 0.0
      %1245 = vmatpush1.msra.mxu0 0.0
      %1246 = vmatprep.subr.mxu0 0.0
      %1247 = vmatpush1.msra.mxu0 0.0
      %1248 = vmatprep.subr.mxu0 0.0
      %1249 = vmatpush1.msra.mxu0 0.0
      %1250 = vmatprep.subr.mxu0 0.0
      %1251 = vmatpush1.msra.mxu0 0.0
      %1252 = vmatprep.subr.mxu0 0.0
      %1253 = vmatpush1.msra.mxu0 0.0
      %1254 = vmatprep.subr.mxu0 0.0
      %1255 = vmatpush1.msra.mxu0 0.0
      %1256 = vmatprep.subr.mxu0 0.0
      %1257 = vmatpush1.msra.mxu0 0.0
      %1258 = vmatprep.subr.mxu0 0.0
      %1259 = vmatpush1.msra.mxu0 0.0
      %1260 = vmatprep.subr.mxu0 0.0
      %1261 = vmatpush1.msra.mxu0 0.0
      %1262 = vmatprep.subr.mxu0 0.0
      %1263 = vmatpush1.msra.mxu0 0.0
      %1264 = vmatprep.subr.mxu0 0.0
      %1265 = vmatpush1.msra.mxu0 0.0
      %1266 = vmatprep.subr.mxu0 0.0
      %1267 = vmatpush1.msra.mxu0 0.0
      %1268 = vmatprep.subr.mxu0 0.0
      %1269 = vmatpush1.msra.mxu0 0.0
      %1270 = vmatprep.subr.mxu0 0.0
      %1271 = vmatpush1.msra.mxu0 0.0
      %1272 = vmatprep.subr.mxu0 0.0
      %1273 = vmatpush1.msra.mxu0 0.0
      %1274 = vmatprep.subr.mxu0 0.0
      %1275 = vmatpush1.msra.mxu0 0.0
      %1276 = vmatprep.subr.mxu0 0.0
      %1277 = vmatpush1.msra.mxu0 0.0
      %1278 = vmatprep.mubr.f32.mxu0 0.0
      %v1279 = vand.u32 %v1208, 4294901760
      %v1280 = vsub.f32 %v1208, %v1279
      %v1281 = vand.u32 %v1280, 4294901760
      %v1282 = vsub.f32 %v1280, %v1281
      %v1283 = vand.u32 %v1282, 4294901760
      %1284 = vmatmul.mubr.f32.gmra.mrb[0].mxu0 %v1283
      %v1285 = vpop.f32.mrb[0].mxu0
      %v1286 = vadd.f32 %v1205, %v1285
      %v1287 = vpop.f32.mrb[0].mxu0
      %v1288 = vadd.f32 %v1205, %v1287
      %1289 = vdwg.mxu0
      %v1290 = vand.u32 %v1197, 4294901760
      %v1291 = vsub.f32 %v1197, %v1290
      %v1292 = vand.u32 %v1291, 4294901760
      %v1293 = vsub.f32 %v1291, %v1292
      %v1294 = vand.u32 %v1293, 4294901760
      %1295 = vmatprep.subr.mxu0 %v1294
      %v1296 = vand.u32 %v1196, 4294901760
      %v1297 = vsub.f32 %v1196, %v1296
      %v1298 = vand.u32 %v1297, 4294901760
      %v1299 = vsub.f32 %v1297, %v1298
      %v1300 = vand.u32 %v1299, 4294901760
      %1301 = vmatpush1.msra.mxu0 %v1300
      %v1302 = vand.u32 %v1199, 4294901760
      %v1303 = vsub.f32 %v1199, %v1302
      %v1304 = vand.u32 %v1303, 4294901760
      %v1305 = vsub.f32 %v1303, %v1304
      %v1306 = vand.u32 %v1305, 4294901760
      %1307 = vmatprep.subr.mxu0 %v1306
      %v1308 = vand.u32 %v1198, 4294901760
      %v1309 = vsub.f32 %v1198, %v1308
      %v1310 = vand.u32 %v1309, 4294901760
      %v1311 = vsub.f32 %v1309, %v1310
      %v1312 = vand.u32 %v1311, 4294901760
      %1313 = vmatpush1.msra.mxu0 %v1312
      %1314 = vmatprep.subr.mxu0 0.0
      %1315 = vmatpush1.msra.mxu0 0.0
      %1316 = vmatprep.subr.mxu0 0.0
      %1317 = vmatpush1.msra.mxu0 0.0
      %1318 = vmatprep.subr.mxu0 0.0
      %1319 = vmatpush1.msra.mxu0 0.0
      %1320 = vmatprep.subr.mxu0 0.0
      %1321 = vmatpush1.msra.mxu0 0.0
      %1322 = vmatprep.subr.mxu0 0.0
      %1323 = vmatpush1.msra.mxu0 0.0
      %1324 = vmatprep.subr.mxu0 0.0
      %1325 = vmatpush1.msra.mxu0 0.0
      %1326 = vmatprep.subr.mxu0 0.0
      %1327 = vmatpush1.msra.mxu0 0.0
      %1328 = vmatprep.subr.mxu0 0.0
      %1329 = vmatpush1.msra.mxu0 0.0
      %1330 = vmatprep.subr.mxu0 0.0
      %1331 = vmatpush1.msra.mxu0 0.0
      %1332 = vmatprep.subr.mxu0 0.0
      %1333 = vmatpush1.msra.mxu0 0.0
      %1334 = vmatprep.subr.mxu0 0.0
      %1335 = vmatpush1.msra.mxu0 0.0
      %1336 = vmatprep.subr.mxu0 0.0
      %1337 = vmatpush1.msra.mxu0 0.0
      %1338 = vmatprep.subr.mxu0 0.0
      %1339 = vmatpush1.msra.mxu0 0.0
      %1340 = vmatprep.subr.mxu0 0.0
      %1341 = vmatpush1.msra.mxu0 0.0
      %1342 = vmatprep.subr.mxu0 0.0
      %1343 = vmatpush1.msra.mxu0 0.0
      %1344 = vmatprep.subr.mxu0 0.0
      %1345 = vmatpush1.msra.mxu0 0.0
      %1346 = vmatprep.subr.mxu0 0.0
      %1347 = vmatpush1.msra.mxu0 0.0
      %1348 = vmatprep.subr.mxu0 0.0
      %1349 = vmatpush1.msra.mxu0 0.0
      %1350 = vmatprep.subr.mxu0 0.0
      %1351 = vmatpush1.msra.mxu0 0.0
      %1352 = vmatprep.subr.mxu0 0.0
      %1353 = vmatpush1.msra.mxu0 0.0
      %1354 = vmatprep.subr.mxu0 0.0
      %1355 = vmatpush1.msra.mxu0 0.0
      %1356 = vmatprep.subr.mxu0 0.0
      %1357 = vmatpush1.msra.mxu0 0.0
      %1358 = vmatprep.subr.mxu0 0.0
      %1359 = vmatpush1.msra.mxu0 0.0
      %1360 = vmatprep.subr.mxu0 0.0
      %1361 = vmatpush1.msra.mxu0 0.0
      %1362 = vmatprep.subr.mxu0 0.0
      %1363 = vmatpush1.msra.mxu0 0.0
      %1364 = vmatprep.subr.mxu0 0.0
      %1365 = vmatpush1.msra.mxu0 0.0
      %1366 = vmatprep.subr.mxu0 0.0
      %1367 = vmatpush1.msra.mxu0 0.0
      %1368 = vmatprep.subr.mxu0 0.0
      %1369 = vmatpush1.msra.mxu0 0.0
      %1370 = vmatprep.subr.mxu0 0.0
      %1371 = vmatpush1.msra.mxu0 0.0
      %1372 = vmatprep.subr.mxu0 0.0
      %1373 = vmatpush1.msra.mxu0 0.0
      %1374 = vmatprep.mubr.f32.mxu0 0.0
      %v1375 = vand.u32 %v1208, 4294901760
      %1376 = vmatmul.mubr.f32.gmra.mrb[0].mxu0 %v1375
      %v1377 = vpop.f32.mrb[0].mxu0
      %v1378 = vadd.f32 %v1286, %v1377
      %v1379 = vpop.f32.mrb[0].mxu0
      %v1380 = vadd.f32 %v1288, %v1379
      %1381 = vdwg.mxu0
      %v1382 = vand.u32 %v1197, 4294901760
      %v1383 = vsub.f32 %v1197, %v1382
      %1384 = vmatprep.subr.mxu0 %v1383
      %v1385 = vand.u32 %v1196, 4294901760
      %v1386 = vsub.f32 %v1196, %v1385
      %1387 = vmatpush1.msra.mxu0 %v1386
      %v1388 = vand.u32 %v1199, 4294901760
      %v1389 = vsub.f32 %v1199, %v1388
      %1390 = vmatprep.subr.mxu0 %v1389
      %v1391 = vand.u32 %v1198, 4294901760
      %v1392 = vsub.f32 %v1198, %v1391
      %1393 = vmatpush1.msra.mxu0 %v1392
      %1394 = vmatprep.subr.mxu0 0.0
      %1395 = vmatpush1.msra.mxu0 0.0
      %1396 = vmatprep.subr.mxu0 0.0
      %1397 = vmatpush1.msra.mxu0 0.0
      %1398 = vmatprep.subr.mxu0 0.0
      %1399 = vmatpush1.msra.mxu0 0.0
      %1400 = vmatprep.subr.mxu0 0.0
      %1401 = vmatpush1.msra.mxu0 0.0
      %1402 = vmatprep.subr.mxu0 0.0
      %1403 = vmatpush1.msra.mxu0 0.0
      %1404 = vmatprep.subr.mxu0 0.0
      %1405 = vmatpush1.msra.mxu0 0.0
      %1406 = vmatprep.subr.mxu0 0.0
      %1407 = vmatpush1.msra.mxu0 0.0
      %1408 = vmatprep.subr.mxu0 0.0
      %1409 = vmatpush1.msra.mxu0 0.0
      %1410 = vmatprep.subr.mxu0 0.0
      %1411 = vmatpush1.msra.mxu0 0.0
      %1412 = vmatprep.subr.mxu0 0.0
      %1413 = vmatpush1.msra.mxu0 0.0
      %1414 = vmatprep.subr.mxu0 0.0
      %1415 = vmatpush1.msra.mxu0 0.0
      %1416 = vmatprep.subr.mxu0 0.0
      %1417 = vmatpush1.msra.mxu0 0.0
      %1418 = vmatprep.subr.mxu0 0.0
      %1419 = vmatpush1.msra.mxu0 0.0
      %1420 = vmatprep.subr.mxu0 0.0
      %1421 = vmatpush1.msra.mxu0 0.0
      %1422 = vmatprep.subr.mxu0 0.0
      %1423 = vmatpush1.msra.mxu0 0.0
      %1424 = vmatprep.subr.mxu0 0.0
      %1425 = vmatpush1.msra.mxu0 0.0
      %1426 = vmatprep.subr.mxu0 0.0
      %1427 = vmatpush1.msra.mxu0 0.0
      %1428 = vmatprep.subr.mxu0 0.0
      %1429 = vmatpush1.msra.mxu0 0.0
      %1430 = vmatprep.subr.mxu0 0.0
      %1431 = vmatpush1.msra.mxu0 0.0
      %1432 = vmatprep.subr.mxu0 0.0
      %1433 = vmatpush1.msra.mxu0 0.0
      %1434 = vmatprep.subr.mxu0 0.0
      %1435 = vmatpush1.msra.mxu0 0.0
      %1436 = vmatprep.subr.mxu0 0.0
      %1437 = vmatpush1.msra.mxu0 0.0
      %1438 = vmatprep.subr.mxu0 0.0
      %1439 = vmatpush1.msra.mxu0 0.0
      %1440 = vmatprep.subr.mxu0 0.0
      %1441 = vmatpush1.msra.mxu0 0.0
      %1442 = vmatprep.subr.mxu0 0.0
      %1443 = vmatpush1.msra.mxu0 0.0
      %1444 = vmatprep.subr.mxu0 0.0
      %1445 = vmatpush1.msra.mxu0 0.0
      %1446 = vmatprep.subr.mxu0 0.0
      %1447 = vmatpush1.msra.mxu0 0.0
      %1448 = vmatprep.subr.mxu0 0.0
      %1449 = vmatpush1.msra.mxu0 0.0
      %1450 = vmatprep.subr.mxu0 0.0
      %1451 = vmatpush1.msra.mxu0 0.0
      %1452 = vmatprep.subr.mxu0 0.0
      %1453 = vmatpush1.msra.mxu0 0.0
      %1454 = vmatprep.mubr.f32.mxu0 0.0
      %v1455 = vand.u32 %v1208, 4294901760
      %v1456 = vsub.f32 %v1208, %v1455
      %1457 = vmatmul.mubr.f32.gmra.mrb[0].mxu0 %v1456
      %v1458 = vpop.f32.mrb[0].mxu0
      %v1459 = vadd.f32 %v1378, %v1458
      %v1460 = vpop.f32.mrb[0].mxu0
      %v1461 = vadd.f32 %v1380, %v1460
      %1462 = vdwg.mxu0
      %v1463 = vand.u32 %v1197, 4294901760
      %1464 = vmatprep.subr.mxu0 %v1463
      %v1465 = vand.u32 %v1196, 4294901760
      %1466 = vmatpush1.msra.mxu0 %v1465
      %v1467 = vand.u32 %v1199, 4294901760
      %1468 = vmatprep.subr.mxu0 %v1467
      %v1469 = vand.u32 %v1198, 4294901760
      %1470 = vmatpush1.msra.mxu0 %v1469
      %1471 = vmatprep.subr.mxu0 0.0
      %1472 = vmatpush1.msra.mxu0 0.0
      %1473 = vmatprep.subr.mxu0 0.0
      %1474 = vmatpush1.msra.mxu0 0.0
      %1475 = vmatprep.subr.mxu0 0.0
      %1476 = vmatpush1.msra.mxu0 0.0
      %1477 = vmatprep.subr.mxu0 0.0
      %1478 = vmatpush1.msra.mxu0 0.0
      %1479 = vmatprep.subr.mxu0 0.0
      %1480 = vmatpush1.msra.mxu0 0.0
      %1481 = vmatprep.subr.mxu0 0.0
      %1482 = vmatpush1.msra.mxu0 0.0
      %1483 = vmatprep.subr.mxu0 0.0
      %1484 = vmatpush1.msra.mxu0 0.0
      %1485 = vmatprep.subr.mxu0 0.0
      %1486 = vmatpush1.msra.mxu0 0.0
      %1487 = vmatprep.subr.mxu0 0.0
      %1488 = vmatpush1.msra.mxu0 0.0
      %1489 = vmatprep.subr.mxu0 0.0
      %1490 = vmatpush1.msra.mxu0 0.0
      %1491 = vmatprep.subr.mxu0 0.0
      %1492 = vmatpush1.msra.mxu0 0.0
      %1493 = vmatprep.subr.mxu0 0.0
      %1494 = vmatpush1.msra.mxu0 0.0
      %1495 = vmatprep.subr.mxu0 0.0
      %1496 = vmatpush1.msra.mxu0 0.0
      %1497 = vmatprep.subr.mxu0 0.0
      %1498 = vmatpush1.msra.mxu0 0.0
      %1499 = vmatprep.subr.mxu0 0.0
      %1500 = vmatpush1.msra.mxu0 0.0
      %1501 = vmatprep.subr.mxu0 0.0
      %1502 = vmatpush1.msra.mxu0 0.0
      %1503 = vmatprep.subr.mxu0 0.0
      %1504 = vmatpush1.msra.mxu0 0.0
      %1505 = vmatprep.subr.mxu0 0.0
      %1506 = vmatpush1.msra.mxu0 0.0
      %1507 = vmatprep.subr.mxu0 0.0
      %1508 = vmatpush1.msra.mxu0 0.0
      %1509 = vmatprep.subr.mxu0 0.0
      %1510 = vmatpush1.msra.mxu0 0.0
      %1511 = vmatprep.subr.mxu0 0.0
      %1512 = vmatpush1.msra.mxu0 0.0
      %1513 = vmatprep.subr.mxu0 0.0
      %1514 = vmatpush1.msra.mxu0 0.0
      %1515 = vmatprep.subr.mxu0 0.0
      %1516 = vmatpush1.msra.mxu0 0.0
      %1517 = vmatprep.subr.mxu0 0.0
      %1518 = vmatpush1.msra.mxu0 0.0
      %1519 = vmatprep.subr.mxu0 0.0
      %1520 = vmatpush1.msra.mxu0 0.0
      %1521 = vmatprep.subr.mxu0 0.0
      %1522 = vmatpush1.msra.mxu0 0.0
      %1523 = vmatprep.subr.mxu0 0.0
      %1524 = vmatpush1.msra.mxu0 0.0
      %1525 = vmatprep.subr.mxu0 0.0
      %1526 = vmatpush1.msra.mxu0 0.0
      %1527 = vmatprep.subr.mxu0 0.0
      %1528 = vmatpush1.msra.mxu0 0.0
      %1529 = vmatprep.subr.mxu0 0.0
      %1530 = vmatpush1.msra.mxu0 0.0
      %1531 = vmatprep.mubr.f32.mxu0 0.0
      %v1532 = vand.u32 %v1208, 4294901760
      %v1533 = vsub.f32 %v1208, %v1532
      %v1534 = vand.u32 %v1533, 4294901760
      %1535 = vmatmul.mubr.f32.gmra.mrb[0].mxu0 %v1534
      %v1536 = vpop.f32.mrb[0].mxu0
      %v1537 = vadd.f32 %v1459, %v1536
      %v1538 = vpop.f32.mrb[0].mxu0
      %v1539 = vadd.f32 %v1461, %v1538
      %1540 = vdwg.mxu0
      %v1541 = vand.u32 %v1197, 4294901760
      %v1542 = vsub.f32 %v1197, %v1541
      %v1543 = vand.u32 %v1542, 4294901760
      %1544 = vmatprep.subr.mxu0 %v1543
      %v1545 = vand.u32 %v1196, 4294901760
      %v1546 = vsub.f32 %v1196, %v1545
      %v1547 = vand.u32 %v1546, 4294901760
      %1548 = vmatpush1.msra.mxu0 %v1547
      %v1549 = vand.u32 %v1199, 4294901760
      %v1550 = vsub.f32 %v1199, %v1549
      %v1551 = vand.u32 %v1550, 4294901760
      %1552 = vmatprep.subr.mxu0 %v1551
      %v1553 = vand.u32 %v1198, 4294901760
      %v1554 = vsub.f32 %v1198, %v1553
      %v1555 = vand.u32 %v1554, 4294901760
      %1556 = vmatpush1.msra.mxu0 %v1555
      %1557 = vmatprep.subr.mxu0 0.0
      %1558 = vmatpush1.msra.mxu0 0.0
      %1559 = vmatprep.subr.mxu0 0.0
      %1560 = vmatpush1.msra.mxu0 0.0
      %1561 = vmatprep.subr.mxu0 0.0
      %1562 = vmatpush1.msra.mxu0 0.0
      %1563 = vmatprep.subr.mxu0 0.0
      %1564 = vmatpush1.msra.mxu0 0.0
      %1565 = vmatprep.subr.mxu0 0.0
      %1566 = vmatpush1.msra.mxu0 0.0
      %1567 = vmatprep.subr.mxu0 0.0
      %1568 = vmatpush1.msra.mxu0 0.0
      %1569 = vmatprep.subr.mxu0 0.0
      %1570 = vmatpush1.msra.mxu0 0.0
      %1571 = vmatprep.subr.mxu0 0.0
      %1572 = vmatpush1.msra.mxu0 0.0
      %1573 = vmatprep.subr.mxu0 0.0
      %1574 = vmatpush1.msra.mxu0 0.0
      %1575 = vmatprep.subr.mxu0 0.0
      %1576 = vmatpush1.msra.mxu0 0.0
      %1577 = vmatprep.subr.mxu0 0.0
      %1578 = vmatpush1.msra.mxu0 0.0
      %1579 = vmatprep.subr.mxu0 0.0
      %1580 = vmatpush1.msra.mxu0 0.0
      %1581 = vmatprep.subr.mxu0 0.0
      %1582 = vmatpush1.msra.mxu0 0.0
      %1583 = vmatprep.subr.mxu0 0.0
      %1584 = vmatpush1.msra.mxu0 0.0
      %1585 = vmatprep.subr.mxu0 0.0
      %1586 = vmatpush1.msra.mxu0 0.0
      %1587 = vmatprep.subr.mxu0 0.0
      %1588 = vmatpush1.msra.mxu0 0.0
      %1589 = vmatprep.subr.mxu0 0.0
      %1590 = vmatpush1.msra.mxu0 0.0
      %1591 = vmatprep.subr.mxu0 0.0
      %1592 = vmatpush1.msra.mxu0 0.0
      %1593 = vmatprep.subr.mxu0 0.0
      %1594 = vmatpush1.msra.mxu0 0.0
      %1595 = vmatprep.subr.mxu0 0.0
      %1596 = vmatpush1.msra.mxu0 0.0
      %1597 = vmatprep.subr.mxu0 0.0
      %1598 = vmatpush1.msra.mxu0 0.0
      %1599 = vmatprep.subr.mxu0 0.0
      %1600 = vmatpush1.msra.mxu0 0.0
      %1601 = vmatprep.subr.mxu0 0.0
      %1602 = vmatpush1.msra.mxu0 0.0
      %1603 = vmatprep.subr.mxu0 0.0
      %1604 = vmatpush1.msra.mxu0 0.0
      %1605 = vmatprep.subr.mxu0 0.0
      %1606 = vmatpush1.msra.mxu0 0.0
      %1607 = vmatprep.subr.mxu0 0.0
      %1608 = vmatpush1.msra.mxu0 0.0
      %1609 = vmatprep.subr.mxu0 0.0
      %1610 = vmatpush1.msra.mxu0 0.0
      %1611 = vmatprep.subr.mxu0 0.0
      %1612 = vmatpush1.msra.mxu0 0.0
      %1613 = vmatprep.subr.mxu0 0.0
      %1614 = vmatpush1.msra.mxu0 0.0
      %1615 = vmatprep.subr.mxu0 0.0
      %1616 = vmatpush1.msra.mxu0 0.0
      %1617 = vmatprep.mubr.f32.mxu0 0.0
      %v1618 = vand.u32 %v1208, 4294901760
      %1619 = vmatmul.mubr.f32.gmra.mrb[0].mxu0 %v1618
      %v1620 = vpop.f32.mrb[0].mxu0
      %v1621 = vadd.f32 %v1537, %v1620
      %v1622 = vpop.f32.mrb[0].mxu0
      %v1623 = vadd.f32 %v1539, %v1622
      %1624 = vdwg.mxu0
      %v1625 = vand.u32 %v1197, 4294901760
      %1626 = vmatprep.subr.mxu0 %v1625
      %v1627 = vand.u32 %v1196, 4294901760
      %1628 = vmatpush1.msra.mxu0 %v1627
      %v1629 = vand.u32 %v1199, 4294901760
      %1630 = vmatprep.subr.mxu0 %v1629
      %v1631 = vand.u32 %v1198, 4294901760
      %1632 = vmatpush1.msra.mxu0 %v1631
      %1633 = vmatprep.subr.mxu0 0.0
      %1634 = vmatpush1.msra.mxu0 0.0
      %1635 = vmatprep.subr.mxu0 0.0
      %1636 = vmatpush1.msra.mxu0 0.0
      %1637 = vmatprep.subr.mxu0 0.0
      %1638 = vmatpush1.msra.mxu0 0.0
      %1639 = vmatprep.subr.mxu0 0.0
      %1640 = vmatpush1.msra.mxu0 0.0
      %1641 = vmatprep.subr.mxu0 0.0
      %1642 = vmatpush1.msra.mxu0 0.0
      %1643 = vmatprep.subr.mxu0 0.0
      %1644 = vmatpush1.msra.mxu0 0.0
      %1645 = vmatprep.subr.mxu0 0.0
      %1646 = vmatpush1.msra.mxu0 0.0
      %1647 = vmatprep.subr.mxu0 0.0
      %1648 = vmatpush1.msra.mxu0 0.0
      %1649 = vmatprep.subr.mxu0 0.0
      %1650 = vmatpush1.msra.mxu0 0.0
      %1651 = vmatprep.subr.mxu0 0.0
      %1652 = vmatpush1.msra.mxu0 0.0
      %1653 = vmatprep.subr.mxu0 0.0
      %1654 = vmatpush1.msra.mxu0 0.0
      %1655 = vmatprep.subr.mxu0 0.0
      %1656 = vmatpush1.msra.mxu0 0.0
      %1657 = vmatprep.subr.mxu0 0.0
      %1658 = vmatpush1.msra.mxu0 0.0
      %1659 = vmatprep.subr.mxu0 0.0
      %1660 = vmatpush1.msra.mxu0 0.0
      %1661 = vmatprep.subr.mxu0 0.0
      %1662 = vmatpush1.msra.mxu0 0.0
      %1663 = vmatprep.subr.mxu0 0.0
      %1664 = vmatpush1.msra.mxu0 0.0
      %1665 = vmatprep.subr.mxu0 0.0
      %1666 = vmatpush1.msra.mxu0 0.0
      %1667 = vmatprep.subr.mxu0 0.0
      %1668 = vmatpush1.msra.mxu0 0.0
      %1669 = vmatprep.subr.mxu0 0.0
      %1670 = vmatpush1.msra.mxu0 0.0
      %1671 = vmatprep.subr.mxu0 0.0
      %1672 = vmatpush1.msra.mxu0 0.0
      %1673 = vmatprep.subr.mxu0 0.0
      %1674 = vmatpush1.msra.mxu0 0.0
      %1675 = vmatprep.subr.mxu0 0.0
      %1676 = vmatpush1.msra.mxu0 0.0
      %1677 = vmatprep.subr.mxu0 0.0
      %1678 = vmatpush1.msra.mxu0 0.0
      %1679 = vmatprep.subr.mxu0 0.0
      %1680 = vmatpush1.msra.mxu0 0.0
      %1681 = vmatprep.subr.mxu0 0.0
      %1682 = vmatpush1.msra.mxu0 0.0
      %1683 = vmatprep.subr.mxu0 0.0
      %1684 = vmatpush1.msra.mxu0 0.0
      %1685 = vmatprep.subr.mxu0 0.0
      %1686 = vmatpush1.msra.mxu0 0.0
      %1687 = vmatprep.subr.mxu0 0.0
      %1688 = vmatpush1.msra.mxu0 0.0
      %1689 = vmatprep.subr.mxu0 0.0
      %1690 = vmatpush1.msra.mxu0 0.0
      %1691 = vmatprep.subr.mxu0 0.0
      %1692 = vmatpush1.msra.mxu0 0.0
      %1693 = vmatprep.mubr.f32.mxu0 0.0
      %v1694 = vand.u32 %v1208, 4294901760
      %1695 = vmatmul.mubr.f32.gmra.mrb[0].mxu0 %v1694
      %v1696 = vpop.f32.mrb[0].mxu0
      %v1697 = vadd.f32 %v1621, %v1696
      %v1698 = vpop.f32.mrb[0].mxu0
      %v1699 = vadd.f32 %v1623, %v1698
      %1700 = vdwg.mxu0
      %v1701 = vtanh.pop %v1697
      %v1702 = vtanh.pop %v1699
      %s1703 = scalar_lea.vmem %s1, 32
      %v1704 = vld [vmem:[%s1703] sm:$0xff]
      %1706 = vset.pattern.permute.xlu0 16
      %1707 = vperm.xlu0 %1706, %v1704
      %v1708 = vpop.permute.xlu0 %1707
      %vm1710 = vcmask 64512
      %v1711 = vsel %vm1710, %v1704, 0
      %v1713 = vand.u32 %v1702, 4294901760
      %1714 = vmatprep.subr.mxu0 %v1713
      %v1715 = vand.u32 %v1701, 4294901760
      %1716 = vmatpush1.msra.mxu0 %v1715
      %1717 = vmatprep.subr.mxu0 0.0
      %1718 = vmatpush1.msra.mxu0 0.0
      %1719 = vmatprep.subr.mxu0 0.0
      %1720 = vmatpush1.msra.mxu0 0.0
      %1721 = vmatprep.subr.mxu0 0.0
      %1722 = vmatpush1.msra.mxu0 0.0
      %1723 = vmatprep.subr.mxu0 0.0
      %1724 = vmatpush1.msra.mxu0 0.0
      %1725 = vmatprep.subr.mxu0 0.0
      %1726 = vmatpush1.msra.mxu0 0.0
      %1727 = vmatprep.subr.mxu0 0.0
      %1728 = vmatpush1.msra.mxu0 0.0
      %1729 = vmatprep.subr.mxu0 0.0
      %1730 = vmatpush1.msra.mxu0 0.0
      %1731 = vmatprep.subr.mxu0 0.0
      %1732 = vmatpush1.msra.mxu0 0.0
      %1733 = vmatprep.subr.mxu0 0.0
      %1734 = vmatpush1.msra.mxu0 0.0
      %1735 = vmatprep.subr.mxu0 0.0
      %1736 = vmatpush1.msra.mxu0 0.0
      %1737 = vmatprep.subr.mxu0 0.0
      %1738 = vmatpush1.msra.mxu0 0.0
      %1739 = vmatprep.subr.mxu0 0.0
      %1740 = vmatpush1.msra.mxu0 0.0
      %1741 = vmatprep.subr.mxu0 0.0
      %1742 = vmatpush1.msra.mxu0 0.0
      %1743 = vmatprep.subr.mxu0 0.0
      %1744 = vmatpush1.msra.mxu0 0.0
      %1745 = vmatprep.subr.mxu0 0.0
      %1746 = vmatpush1.msra.mxu0 0.0
      %1747 = vmatprep.subr.mxu0 0.0
      %1748 = vmatpush1.msra.mxu0 0.0
      %1749 = vmatprep.subr.mxu0 0.0
      %1750 = vmatpush1.msra.mxu0 0.0
      %1751 = vmatprep.subr.mxu0 0.0
      %1752 = vmatpush1.msra.mxu0 0.0
      %1753 = vmatprep.subr.mxu0 0.0
      %1754 = vmatpush1.msra.mxu0 0.0
      %1755 = vmatprep.subr.mxu0 0.0
      %1756 = vmatpush1.msra.mxu0 0.0
      %1757 = vmatprep.subr.mxu0 0.0
      %1758 = vmatpush1.msra.mxu0 0.0
      %1759 = vmatprep.subr.mxu0 0.0
      %1760 = vmatpush1.msra.mxu0 0.0
      %1761 = vmatprep.subr.mxu0 0.0
      %1762 = vmatpush1.msra.mxu0 0.0
      %1763 = vmatprep.subr.mxu0 0.0
      %1764 = vmatpush1.msra.mxu0 0.0
      %1765 = vmatprep.subr.mxu0 0.0
      %1766 = vmatpush1.msra.mxu0 0.0
      %1767 = vmatprep.subr.mxu0 0.0
      %1768 = vmatpush1.msra.mxu0 0.0
      %1769 = vmatprep.subr.mxu0 0.0
      %1770 = vmatpush1.msra.mxu0 0.0
      %1771 = vmatprep.subr.mxu0 0.0
      %1772 = vmatpush1.msra.mxu0 0.0
      %1773 = vmatprep.subr.mxu0 0.0
      %1774 = vmatpush1.msra.mxu0 0.0
      %1775 = vmatprep.subr.mxu0 0.0
      %1776 = vmatpush1.msra.mxu0 0.0
      %1777 = vmatprep.subr.mxu0 0.0
      %1778 = vmatpush1.msra.mxu0 0.0
      %1779 = vmatprep.mubr.f32.mxu0 0.0
      %v1780 = vand.u32 %v1711, 4294901760
      %v1781 = vsub.f32 %v1711, %v1780
      %v1782 = vand.u32 %v1781, 4294901760
      %v1783 = vsub.f32 %v1781, %v1782
      %v1784 = vand.u32 %v1783, 4294901760
      %1785 = vmatmul.mubr.f32.gmra.mrb[0].mxu0 %v1784
      %v1786 = vpop.f32.mrb[0].mxu0
      %v1787 = vadd.f32 %v1708, %v1786
      %v1788 = vpop.f32.mrb[0].mxu0
      %v1789 = vadd.f32 %v1708, %v1788
      %1790 = vdwg.mxu0
      %v1791 = vand.u32 %v1702, 4294901760
      %v1792 = vsub.f32 %v1702, %v1791
      %v1793 = vand.u32 %v1792, 4294901760
      %v1794 = vsub.f32 %v1792, %v1793
      %v1795 = vand.u32 %v1794, 4294901760
      %1796 = vmatprep.subr.mxu0 %v1795
      %v1797 = vand.u32 %v1701, 4294901760
      %v1798 = vsub.f32 %v1701, %v1797
      %v1799 = vand.u32 %v1798, 4294901760
      %v1800 = vsub.f32 %v1798, %v1799
      %v1801 = vand.u32 %v1800, 4294901760
      %1802 = vmatpush1.msra.mxu0 %v1801
      %1803 = vmatprep.subr.mxu0 0.0
      %1804 = vmatpush1.msra.mxu0 0.0
      %1805 = vmatprep.subr.mxu0 0.0
      %1806 = vmatpush1.msra.mxu0 0.0
      %1807 = vmatprep.subr.mxu0 0.0
      %1808 = vmatpush1.msra.mxu0 0.0
      %1809 = vmatprep.subr.mxu0 0.0
      %1810 = vmatpush1.msra.mxu0 0.0
      %1811 = vmatprep.subr.mxu0 0.0
      %1812 = vmatpush1.msra.mxu0 0.0
      %1813 = vmatprep.subr.mxu0 0.0
      %1814 = vmatpush1.msra.mxu0 0.0
      %1815 = vmatprep.subr.mxu0 0.0
      %1816 = vmatpush1.msra.mxu0 0.0
      %1817 = vmatprep.subr.mxu0 0.0
      %1818 = vmatpush1.msra.mxu0 0.0
      %1819 = vmatprep.subr.mxu0 0.0
      %1820 = vmatpush1.msra.mxu0 0.0
      %1821 = vmatprep.subr.mxu0 0.0
      %1822 = vmatpush1.msra.mxu0 0.0
      %1823 = vmatprep.subr.mxu0 0.0
      %1824 = vmatpush1.msra.mxu0 0.0
      %1825 = vmatprep.subr.mxu0 0.0
      %1826 = vmatpush1.msra.mxu0 0.0
      %1827 = vmatprep.subr.mxu0 0.0
      %1828 = vmatpush1.msra.mxu0 0.0
      %1829 = vmatprep.subr.mxu0 0.0
      %1830 = vmatpush1.msra.mxu0 0.0
      %1831 = vmatprep.subr.mxu0 0.0
      %1832 = vmatpush1.msra.mxu0 0.0
      %1833 = vmatprep.subr.mxu0 0.0
      %1834 = vmatpush1.msra.mxu0 0.0
      %1835 = vmatprep.subr.mxu0 0.0
      %1836 = vmatpush1.msra.mxu0 0.0
      %1837 = vmatprep.subr.mxu0 0.0
      %1838 = vmatpush1.msra.mxu0 0.0
      %1839 = vmatprep.subr.mxu0 0.0
      %1840 = vmatpush1.msra.mxu0 0.0
      %1841 = vmatprep.subr.mxu0 0.0
      %1842 = vmatpush1.msra.mxu0 0.0
      %1843 = vmatprep.subr.mxu0 0.0
      %1844 = vmatpush1.msra.mxu0 0.0
      %1845 = vmatprep.subr.mxu0 0.0
      %1846 = vmatpush1.msra.mxu0 0.0
      %1847 = vmatprep.subr.mxu0 0.0
      %1848 = vmatpush1.msra.mxu0 0.0
      %1849 = vmatprep.subr.mxu0 0.0
      %1850 = vmatpush1.msra.mxu0 0.0
      %1851 = vmatprep.subr.mxu0 0.0
      %1852 = vmatpush1.msra.mxu0 0.0
      %1853 = vmatprep.subr.mxu0 0.0
      %1854 = vmatpush1.msra.mxu0 0.0
      %1855 = vmatprep.subr.mxu0 0.0
      %1856 = vmatpush1.msra.mxu0 0.0
      %1857 = vmatprep.subr.mxu0 0.0
      %1858 = vmatpush1.msra.mxu0 0.0
      %1859 = vmatprep.subr.mxu0 0.0
      %1860 = vmatpush1.msra.mxu0 0.0
      %1861 = vmatprep.subr.mxu0 0.0
      %1862 = vmatpush1.msra.mxu0 0.0
      %1863 = vmatprep.subr.mxu0 0.0
      %1864 = vmatpush1.msra.mxu0 0.0
      %1865 = vmatprep.mubr.f32.mxu0 0.0
      %v1866 = vand.u32 %v1711, 4294901760
      %1867 = vmatmul.mubr.f32.gmra.mrb[0].mxu0 %v1866
      %v1868 = vpop.f32.mrb[0].mxu0
      %v1869 = vadd.f32 %v1787, %v1868
      %v1870 = vpop.f32.mrb[0].mxu0
      %v1871 = vadd.f32 %v1789, %v1870
      %1872 = vdwg.mxu0
      %v1873 = vand.u32 %v1702, 4294901760
      %v1874 = vsub.f32 %v1702, %v1873
      %1875 = vmatprep.subr.mxu0 %v1874
      %v1876 = vand.u32 %v1701, 4294901760
      %v1877 = vsub.f32 %v1701, %v1876
      %1878 = vmatpush1.msra.mxu0 %v1877
      %1879 = vmatprep.subr.mxu0 0.0
      %1880 = vmatpush1.msra.mxu0 0.0
      %1881 = vmatprep.subr.mxu0 0.0
      %1882 = vmatpush1.msra.mxu0 0.0
      %1883 = vmatprep.subr.mxu0 0.0
      %1884 = vmatpush1.msra.mxu0 0.0
      %1885 = vmatprep.subr.mxu0 0.0
      %1886 = vmatpush1.msra.mxu0 0.0
      %1887 = vmatprep.subr.mxu0 0.0
      %1888 = vmatpush1.msra.mxu0 0.0
      %1889 = vmatprep.subr.mxu0 0.0
      %1890 = vmatpush1.msra.mxu0 0.0
      %1891 = vmatprep.subr.mxu0 0.0
      %1892 = vmatpush1.msra.mxu0 0.0
      %1893 = vmatprep.subr.mxu0 0.0
      %1894 = vmatpush1.msra.mxu0 0.0
      %1895 = vmatprep.subr.mxu0 0.0
      %1896 = vmatpush1.msra.mxu0 0.0
      %1897 = vmatprep.subr.mxu0 0.0
      %1898 = vmatpush1.msra.mxu0 0.0
      %1899 = vmatprep.subr.mxu0 0.0
      %1900 = vmatpush1.msra.mxu0 0.0
      %1901 = vmatprep.subr.mxu0 0.0
      %1902 = vmatpush1.msra.mxu0 0.0
      %1903 = vmatprep.subr.mxu0 0.0
      %1904 = vmatpush1.msra.mxu0 0.0
      %1905 = vmatprep.subr.mxu0 0.0
      %1906 = vmatpush1.msra.mxu0 0.0
      %1907 = vmatprep.subr.mxu0 0.0
      %1908 = vmatpush1.msra.mxu0 0.0
      %1909 = vmatprep.subr.mxu0 0.0
      %1910 = vmatpush1.msra.mxu0 0.0
      %1911 = vmatprep.subr.mxu0 0.0
      %1912 = vmatpush1.msra.mxu0 0.0
      %1913 = vmatprep.subr.mxu0 0.0
      %1914 = vmatpush1.msra.mxu0 0.0
      %1915 = vmatprep.subr.mxu0 0.0
      %1916 = vmatpush1.msra.mxu0 0.0
      %1917 = vmatprep.subr.mxu0 0.0
      %1918 = vmatpush1.msra.mxu0 0.0
      %1919 = vmatprep.subr.mxu0 0.0
      %1920 = vmatpush1.msra.mxu0 0.0
      %1921 = vmatprep.subr.mxu0 0.0
      %1922 = vmatpush1.msra.mxu0 0.0
      %1923 = vmatprep.subr.mxu0 0.0
      %1924 = vmatpush1.msra.mxu0 0.0
      %1925 = vmatprep.subr.mxu0 0.0
      %1926 = vmatpush1.msra.mxu0 0.0
      %1927 = vmatprep.subr.mxu0 0.0
      %1928 = vmatpush1.msra.mxu0 0.0
      %1929 = vmatprep.subr.mxu0 0.0
      %1930 = vmatpush1.msra.mxu0 0.0
      %1931 = vmatprep.subr.mxu0 0.0
      %1932 = vmatpush1.msra.mxu0 0.0
      %1933 = vmatprep.subr.mxu0 0.0
      %1934 = vmatpush1.msra.mxu0 0.0
      %1935 = vmatprep.subr.mxu0 0.0
      %1936 = vmatpush1.msra.mxu0 0.0
      %1937 = vmatprep.subr.mxu0 0.0
      %1938 = vmatpush1.msra.mxu0 0.0
      %1939 = vmatprep.subr.mxu0 0.0
      %1940 = vmatpush1.msra.mxu0 0.0
      %1941 = vmatprep.mubr.f32.mxu0 0.0
      %v1942 = vand.u32 %v1711, 4294901760
      %v1943 = vsub.f32 %v1711, %v1942
      %1944 = vmatmul.mubr.f32.gmra.mrb[0].mxu0 %v1943
      %v1945 = vpop.f32.mrb[0].mxu0
      %v1946 = vadd.f32 %v1869, %v1945
      %v1947 = vpop.f32.mrb[0].mxu0
      %v1948 = vadd.f32 %v1871, %v1947
      %1949 = vdwg.mxu0
      %v1950 = vand.u32 %v1702, 4294901760
      %1951 = vmatprep.subr.mxu0 %v1950
      %v1952 = vand.u32 %v1701, 4294901760
      %1953 = vmatpush1.msra.mxu0 %v1952
      %1954 = vmatprep.subr.mxu0 0.0
      %1955 = vmatpush1.msra.mxu0 0.0
      %1956 = vmatprep.subr.mxu0 0.0
      %1957 = vmatpush1.msra.mxu0 0.0
      %1958 = vmatprep.subr.mxu0 0.0
      %1959 = vmatpush1.msra.mxu0 0.0
      %1960 = vmatprep.subr.mxu0 0.0
      %1961 = vmatpush1.msra.mxu0 0.0
      %1962 = vmatprep.subr.mxu0 0.0
      %1963 = vmatpush1.msra.mxu0 0.0
      %1964 = vmatprep.subr.mxu0 0.0
      %1965 = vmatpush1.msra.mxu0 0.0
      %1966 = vmatprep.subr.mxu0 0.0
      %1967 = vmatpush1.msra.mxu0 0.0
      %1968 = vmatprep.subr.mxu0 0.0
      %1969 = vmatpush1.msra.mxu0 0.0
      %1970 = vmatprep.subr.mxu0 0.0
      %1971 = vmatpush1.msra.mxu0 0.0
      %1972 = vmatprep.subr.mxu0 0.0
      %1973 = vmatpush1.msra.mxu0 0.0
      %1974 = vmatprep.subr.mxu0 0.0
      %1975 = vmatpush1.msra.mxu0 0.0
      %1976 = vmatprep.subr.mxu0 0.0
      %1977 = vmatpush1.msra.mxu0 0.0
      %1978 = vmatprep.subr.mxu0 0.0
      %1979 = vmatpush1.msra.mxu0 0.0
      %1980 = vmatprep.subr.mxu0 0.0
      %1981 = vmatpush1.msra.mxu0 0.0
      %1982 = vmatprep.subr.mxu0 0.0
      %1983 = vmatpush1.msra.mxu0 0.0
      %1984 = vmatprep.subr.mxu0 0.0
      %1985 = vmatpush1.msra.mxu0 0.0
      %1986 = vmatprep.subr.mxu0 0.0
      %1987 = vmatpush1.msra.mxu0 0.0
      %1988 = vmatprep.subr.mxu0 0.0
      %1989 = vmatpush1.msra.mxu0 0.0
      %1990 = vmatprep.subr.mxu0 0.0
      %1991 = vmatpush1.msra.mxu0 0.0
      %1992 = vmatprep.subr.mxu0 0.0
      %1993 = vmatpush1.msra.mxu0 0.0
      %1994 = vmatprep.subr.mxu0 0.0
      %1995 = vmatpush1.msra.mxu0 0.0
      %1996 = vmatprep.subr.mxu0 0.0
      %1997 = vmatpush1.msra.mxu0 0.0
      %1998 = vmatprep.subr.mxu0 0.0
      %1999 = vmatpush1.msra.mxu0 0.0
      %2000 = vmatprep.subr.mxu0 0.0
      %2001 = vmatpush1.msra.mxu0 0.0
      %2002 = vmatprep.subr.mxu0 0.0
      %2003 = vmatpush1.msra.mxu0 0.0
      %2004 = vmatprep.subr.mxu0 0.0
      %2005 = vmatpush1.msra.mxu0 0.0
      %2006 = vmatprep.subr.mxu0 0.0
      %2007 = vmatpush1.msra.mxu0 0.0
      %2008 = vmatprep.subr.mxu0 0.0
      %2009 = vmatpush1.msra.mxu0 0.0
      %2010 = vmatprep.subr.mxu0 0.0
      %2011 = vmatpush1.msra.mxu0 0.0
      %2012 = vmatprep.subr.mxu0 0.0
      %2013 = vmatpush1.msra.mxu0 0.0
      %2014 = vmatprep.subr.mxu0 0.0
      %2015 = vmatpush1.msra.mxu0 0.0
      %2016 = vmatprep.mubr.f32.mxu0 0.0
      %v2017 = vand.u32 %v1711, 4294901760
      %v2018 = vsub.f32 %v1711, %v2017
      %v2019 = vand.u32 %v2018, 4294901760
      %2020 = vmatmul.mubr.f32.gmra.mrb[0].mxu0 %v2019
      %v2021 = vpop.f32.mrb[0].mxu0
      %v2022 = vadd.f32 %v1946, %v2021
      %v2023 = vpop.f32.mrb[0].mxu0
      %v2024 = vadd.f32 %v1948, %v2023
      %2025 = vdwg.mxu0
      %v2026 = vand.u32 %v1702, 4294901760
      %v2027 = vsub.f32 %v1702, %v2026
      %v2028 = vand.u32 %v2027, 4294901760
      %2029 = vmatprep.subr.mxu0 %v2028
      %v2030 = vand.u32 %v1701, 4294901760
      %v2031 = vsub.f32 %v1701, %v2030
      %v2032 = vand.u32 %v2031, 4294901760
      %2033 = vmatpush1.msra.mxu0 %v2032
      %2034 = vmatprep.subr.mxu0 0.0
      %2035 = vmatpush1.msra.mxu0 0.0
      %2036 = vmatprep.subr.mxu0 0.0
      %2037 = vmatpush1.msra.mxu0 0.0
      %2038 = vmatprep.subr.mxu0 0.0
      %2039 = vmatpush1.msra.mxu0 0.0
      %2040 = vmatprep.subr.mxu0 0.0
      %2041 = vmatpush1.msra.mxu0 0.0
      %2042 = vmatprep.subr.mxu0 0.0
      %2043 = vmatpush1.msra.mxu0 0.0
      %2044 = vmatprep.subr.mxu0 0.0
      %2045 = vmatpush1.msra.mxu0 0.0
      %2046 = vmatprep.subr.mxu0 0.0
      %2047 = vmatpush1.msra.mxu0 0.0
      %2048 = vmatprep.subr.mxu0 0.0
      %2049 = vmatpush1.msra.mxu0 0.0
      %2050 = vmatprep.subr.mxu0 0.0
      %2051 = vmatpush1.msra.mxu0 0.0
      %2052 = vmatprep.subr.mxu0 0.0
      %2053 = vmatpush1.msra.mxu0 0.0
      %2054 = vmatprep.subr.mxu0 0.0
      %2055 = vmatpush1.msra.mxu0 0.0
      %2056 = vmatprep.subr.mxu0 0.0
      %2057 = vmatpush1.msra.mxu0 0.0
      %2058 = vmatprep.subr.mxu0 0.0
      %2059 = vmatpush1.msra.mxu0 0.0
      %2060 = vmatprep.subr.mxu0 0.0
      %2061 = vmatpush1.msra.mxu0 0.0
      %2062 = vmatprep.subr.mxu0 0.0
      %2063 = vmatpush1.msra.mxu0 0.0
      %2064 = vmatprep.subr.mxu0 0.0
      %2065 = vmatpush1.msra.mxu0 0.0
      %2066 = vmatprep.subr.mxu0 0.0
      %2067 = vmatpush1.msra.mxu0 0.0
      %2068 = vmatprep.subr.mxu0 0.0
      %2069 = vmatpush1.msra.mxu0 0.0
      %2070 = vmatprep.subr.mxu0 0.0
      %2071 = vmatpush1.msra.mxu0 0.0
      %2072 = vmatprep.subr.mxu0 0.0
      %2073 = vmatpush1.msra.mxu0 0.0
      %2074 = vmatprep.subr.mxu0 0.0
      %2075 = vmatpush1.msra.mxu0 0.0
      %2076 = vmatprep.subr.mxu0 0.0
      %2077 = vmatpush1.msra.mxu0 0.0
      %2078 = vmatprep.subr.mxu0 0.0
      %2079 = vmatpush1.msra.mxu0 0.0
      %2080 = vmatprep.subr.mxu0 0.0
      %2081 = vmatpush1.msra.mxu0 0.0
      %2082 = vmatprep.subr.mxu0 0.0
      %2083 = vmatpush1.msra.mxu0 0.0
      %2084 = vmatprep.subr.mxu0 0.0
      %2085 = vmatpush1.msra.mxu0 0.0
      %2086 = vmatprep.subr.mxu0 0.0
      %2087 = vmatpush1.msra.mxu0 0.0
      %2088 = vmatprep.subr.mxu0 0.0
      %2089 = vmatpush1.msra.mxu0 0.0
      %2090 = vmatprep.subr.mxu0 0.0
      %2091 = vmatpush1.msra.mxu0 0.0
      %2092 = vmatprep.subr.mxu0 0.0
      %2093 = vmatpush1.msra.mxu0 0.0
      %2094 = vmatprep.subr.mxu0 0.0
      %2095 = vmatpush1.msra.mxu0 0.0
      %2096 = vmatprep.mubr.f32.mxu0 0.0
      %v2097 = vand.u32 %v1711, 4294901760
      %2098 = vmatmul.mubr.f32.gmra.mrb[0].mxu0 %v2097
      %v2099 = vpop.f32.mrb[0].mxu0
      %v2100 = vadd.f32 %v2022, %v2099
      %v2101 = vpop.f32.mrb[0].mxu0
      %v2102 = vadd.f32 %v2024, %v2101
      %2103 = vdwg.mxu0
      %v2104 = vand.u32 %v1702, 4294901760
      %2105 = vmatprep.subr.mxu0 %v2104
      %v2106 = vand.u32 %v1701, 4294901760
      %2107 = vmatpush1.msra.mxu0 %v2106
      %2108 = vmatprep.subr.mxu0 0.0
      %2109 = vmatpush1.msra.mxu0 0.0
      %2110 = vmatprep.subr.mxu0 0.0
      %2111 = vmatpush1.msra.mxu0 0.0
      %2112 = vmatprep.subr.mxu0 0.0
      %2113 = vmatpush1.msra.mxu0 0.0
      %2114 = vmatprep.subr.mxu0 0.0
      %2115 = vmatpush1.msra.mxu0 0.0
      %2116 = vmatprep.subr.mxu0 0.0
      %2117 = vmatpush1.msra.mxu0 0.0
      %2118 = vmatprep.subr.mxu0 0.0
      %2119 = vmatpush1.msra.mxu0 0.0
      %2120 = vmatprep.subr.mxu0 0.0
      %2121 = vmatpush1.msra.mxu0 0.0
      %2122 = vmatprep.subr.mxu0 0.0
      %2123 = vmatpush1.msra.mxu0 0.0
      %2124 = vmatprep.subr.mxu0 0.0
      %2125 = vmatpush1.msra.mxu0 0.0
      %2126 = vmatprep.subr.mxu0 0.0
      %2127 = vmatpush1.msra.mxu0 0.0
      %2128 = vmatprep.subr.mxu0 0.0
      %2129 = vmatpush1.msra.mxu0 0.0
      %2130 = vmatprep.subr.mxu0 0.0
      %2131 = vmatpush1.msra.mxu0 0.0
      %2132 = vmatprep.subr.mxu0 0.0
      %2133 = vmatpush1.msra.mxu0 0.0
      %2134 = vmatprep.subr.mxu0 0.0
      %2135 = vmatpush1.msra.mxu0 0.0
      %2136 = vmatprep.subr.mxu0 0.0
      %2137 = vmatpush1.msra.mxu0 0.0
      %2138 = vmatprep.subr.mxu0 0.0
      %2139 = vmatpush1.msra.mxu0 0.0
      %2140 = vmatprep.subr.mxu0 0.0
      %2141 = vmatpush1.msra.mxu0 0.0
      %2142 = vmatprep.subr.mxu0 0.0
      %2143 = vmatpush1.msra.mxu0 0.0
      %2144 = vmatprep.subr.mxu0 0.0
      %2145 = vmatpush1.msra.mxu0 0.0
      %2146 = vmatprep.subr.mxu0 0.0
      %2147 = vmatpush1.msra.mxu0 0.0
      %2148 = vmatprep.subr.mxu0 0.0
      %2149 = vmatpush1.msra.mxu0 0.0
      %2150 = vmatprep.subr.mxu0 0.0
      %2151 = vmatpush1.msra.mxu0 0.0
      %2152 = vmatprep.subr.mxu0 0.0
      %2153 = vmatpush1.msra.mxu0 0.0
      %2154 = vmatprep.subr.mxu0 0.0
      %2155 = vmatpush1.msra.mxu0 0.0
      %2156 = vmatprep.subr.mxu0 0.0
      %2157 = vmatpush1.msra.mxu0 0.0
      %2158 = vmatprep.subr.mxu0 0.0
      %2159 = vmatpush1.msra.mxu0 0.0
      %2160 = vmatprep.subr.mxu0 0.0
      %2161 = vmatpush1.msra.mxu0 0.0
      %2162 = vmatprep.subr.mxu0 0.0
      %2163 = vmatpush1.msra.mxu0 0.0
      %2164 = vmatprep.subr.mxu0 0.0
      %2165 = vmatpush1.msra.mxu0 0.0
      %2166 = vmatprep.subr.mxu0 0.0
      %2167 = vmatpush1.msra.mxu0 0.0
      %2168 = vmatprep.subr.mxu0 0.0
      %2169 = vmatpush1.msra.mxu0 0.0
      %2170 = vmatprep.mubr.f32.mxu0 0.0
      %v2171 = vand.u32 %v1711, 4294901760
      %2172 = vmatmul.mubr.f32.gmra.mrb[0].mxu0 %v2171
      %v2173 = vpop.f32.mrb[0].mxu0
      %v2174 = vadd.f32 %v2100, %v2173
      %v2175 = vpop.f32.mrb[0].mxu0
      %v2176 = vadd.f32 %v2102, %v2175
      %2177 = vdwg.mxu0
      %v2178 = vtanh.pop %v2174
      %v2179 = vtanh.pop %v2176
      %s2180 = scalar_lea.vmem %s1, 48
      %v2181 = vld [vmem:[%s2180] sm:$0xff]
      %2183 = vset.pattern.permute.xlu0 16
      %2184 = vperm.xlu0 %2183, %v2181
      %v2185 = vpop.permute.xlu0 %2184
      %v2187 = vsel %vm1710, %v2181, 0
      %v2189 = vand.u32 %v2179, 4294901760
      %2190 = vmatprep.subr.mxu0 %v2189
      %v2191 = vand.u32 %v2178, 4294901760
      %2192 = vmatpush1.msra.mxu0 %v2191
      %2193 = vmatprep.subr.mxu0 0.0
      %2194 = vmatpush1.msra.mxu0 0.0
      %2195 = vmatprep.subr.mxu0 0.0
      %2196 = vmatpush1.msra.mxu0 0.0
      %2197 = vmatprep.subr.mxu0 0.0
      %2198 = vmatpush1.msra.mxu0 0.0
      %2199 = vmatprep.subr.mxu0 0.0
      %2200 = vmatpush1.msra.mxu0 0.0
      %2201 = vmatprep.subr.mxu0 0.0
      %2202 = vmatpush1.msra.mxu0 0.0
      %2203 = vmatprep.subr.mxu0 0.0
      %2204 = vmatpush1.msra.mxu0 0.0
      %2205 = vmatprep.subr.mxu0 0.0
      %2206 = vmatpush1.msra.mxu0 0.0
      %2207 = vmatprep.subr.mxu0 0.0
      %2208 = vmatpush1.msra.mxu0 0.0
      %2209 = vmatprep.subr.mxu0 0.0
      %2210 = vmatpush1.msra.mxu0 0.0
      %2211 = vmatprep.subr.mxu0 0.0
      %2212 = vmatpush1.msra.mxu0 0.0
      %2213 = vmatprep.subr.mxu0 0.0
      %2214 = vmatpush1.msra.mxu0 0.0
      %2215 = vmatprep.subr.mxu0 0.0
      %2216 = vmatpush1.msra.mxu0 0.0
      %2217 = vmatprep.subr.mxu0 0.0
      %2218 = vmatpush1.msra.mxu0 0.0
      %2219 = vmatprep.subr.mxu0 0.0
      %2220 = vmatpush1.msra.mxu0 0.0
      %2221 = vmatprep.subr.mxu0 0.0
      %2222 = vmatpush1.msra.mxu0 0.0
      %2223 = vmatprep.subr.mxu0 0.0
      %2224 = vmatpush1.msra.mxu0 0.0
      %2225 = vmatprep.subr.mxu0 0.0
      %2226 = vmatpush1.msra.mxu0 0.0
      %2227 = vmatprep.subr.mxu0 0.0
      %2228 = vmatpush1.msra.mxu0 0.0
      %2229 = vmatprep.subr.mxu0 0.0
      %2230 = vmatpush1.msra.mxu0 0.0
      %2231 = vmatprep.subr.mxu0 0.0
      %2232 = vmatpush1.msra.mxu0 0.0
      %2233 = vmatprep.subr.mxu0 0.0
      %2234 = vmatpush1.msra.mxu0 0.0
      %2235 = vmatprep.subr.mxu0 0.0
      %2236 = vmatpush1.msra.mxu0 0.0
      %2237 = vmatprep.subr.mxu0 0.0
      %2238 = vmatpush1.msra.mxu0 0.0
      %2239 = vmatprep.subr.mxu0 0.0
      %2240 = vmatpush1.msra.mxu0 0.0
      %2241 = vmatprep.subr.mxu0 0.0
      %2242 = vmatpush1.msra.mxu0 0.0
      %2243 = vmatprep.subr.mxu0 0.0
      %2244 = vmatpush1.msra.mxu0 0.0
      %2245 = vmatprep.subr.mxu0 0.0
      %2246 = vmatpush1.msra.mxu0 0.0
      %2247 = vmatprep.subr.mxu0 0.0
      %2248 = vmatpush1.msra.mxu0 0.0
      %2249 = vmatprep.subr.mxu0 0.0
      %2250 = vmatpush1.msra.mxu0 0.0
      %2251 = vmatprep.subr.mxu0 0.0
      %2252 = vmatpush1.msra.mxu0 0.0
      %2253 = vmatprep.subr.mxu0 0.0
      %2254 = vmatpush1.msra.mxu0 0.0
      %2255 = vmatprep.mubr.f32.mxu0 0.0
      %v2256 = vand.u32 %v2187, 4294901760
      %v2257 = vsub.f32 %v2187, %v2256
      %v2258 = vand.u32 %v2257, 4294901760
      %v2259 = vsub.f32 %v2257, %v2258
      %v2260 = vand.u32 %v2259, 4294901760
      %2261 = vmatmul.mubr.f32.gmra.mrb[0].mxu0 %v2260
      %v2262 = vpop.f32.mrb[0].mxu0
      %v2263 = vadd.f32 %v2185, %v2262
      %v2264 = vpop.f32.mrb[0].mxu0
      %v2265 = vadd.f32 %v2185, %v2264
      %2266 = vdwg.mxu0
      %v2267 = vand.u32 %v2179, 4294901760
      %v2268 = vsub.f32 %v2179, %v2267
      %v2269 = vand.u32 %v2268, 4294901760
      %v2270 = vsub.f32 %v2268, %v2269
      %v2271 = vand.u32 %v2270, 4294901760
      %2272 = vmatprep.subr.mxu0 %v2271
      %v2273 = vand.u32 %v2178, 4294901760
      %v2274 = vsub.f32 %v2178, %v2273
      %v2275 = vand.u32 %v2274, 4294901760
      %v2276 = vsub.f32 %v2274, %v2275
      %v2277 = vand.u32 %v2276, 4294901760
      %2278 = vmatpush1.msra.mxu0 %v2277
      %2279 = vmatprep.subr.mxu0 0.0
      %2280 = vmatpush1.msra.mxu0 0.0
      %2281 = vmatprep.subr.mxu0 0.0
      %2282 = vmatpush1.msra.mxu0 0.0
      %2283 = vmatprep.subr.mxu0 0.0
      %2284 = vmatpush1.msra.mxu0 0.0
      %2285 = vmatprep.subr.mxu0 0.0
      %2286 = vmatpush1.msra.mxu0 0.0
      %2287 = vmatprep.subr.mxu0 0.0
      %2288 = vmatpush1.msra.mxu0 0.0
      %2289 = vmatprep.subr.mxu0 0.0
      %2290 = vmatpush1.msra.mxu0 0.0
      %2291 = vmatprep.subr.mxu0 0.0
      %2292 = vmatpush1.msra.mxu0 0.0
      %2293 = vmatprep.subr.mxu0 0.0
      %2294 = vmatpush1.msra.mxu0 0.0
      %2295 = vmatprep.subr.mxu0 0.0
      %2296 = vmatpush1.msra.mxu0 0.0
      %2297 = vmatprep.subr.mxu0 0.0
      %2298 = vmatpush1.msra.mxu0 0.0
      %2299 = vmatprep.subr.mxu0 0.0
      %2300 = vmatpush1.msra.mxu0 0.0
      %2301 = vmatprep.subr.mxu0 0.0
      %2302 = vmatpush1.msra.mxu0 0.0
      %2303 = vmatprep.subr.mxu0 0.0
      %2304 = vmatpush1.msra.mxu0 0.0
      %2305 = vmatprep.subr.mxu0 0.0
      %2306 = vmatpush1.msra.mxu0 0.0
      %2307 = vmatprep.subr.mxu0 0.0
      %2308 = vmatpush1.msra.mxu0 0.0
      %2309 = vmatprep.subr.mxu0 0.0
      %2310 = vmatpush1.msra.mxu0 0.0
      %2311 = vmatprep.subr.mxu0 0.0
      %2312 = vmatpush1.msra.mxu0 0.0
      %2313 = vmatprep.subr.mxu0 0.0
      %2314 = vmatpush1.msra.mxu0 0.0
      %2315 = vmatprep.subr.mxu0 0.0
      %2316 = vmatpush1.msra.mxu0 0.0
      %2317 = vmatprep.subr.mxu0 0.0
      %2318 = vmatpush1.msra.mxu0 0.0
      %2319 = vmatprep.subr.mxu0 0.0
      %2320 = vmatpush1.msra.mxu0 0.0
      %2321 = vmatprep.subr.mxu0 0.0
      %2322 = vmatpush1.msra.mxu0 0.0
      %2323 = vmatprep.subr.mxu0 0.0
      %2324 = vmatpush1.msra.mxu0 0.0
      %2325 = vmatprep.subr.mxu0 0.0
      %2326 = vmatpush1.msra.mxu0 0.0
      %2327 = vmatprep.subr.mxu0 0.0
      %2328 = vmatpush1.msra.mxu0 0.0
      %2329 = vmatprep.subr.mxu0 0.0
      %2330 = vmatpush1.msra.mxu0 0.0
      %2331 = vmatprep.subr.mxu0 0.0
      %2332 = vmatpush1.msra.mxu0 0.0
      %2333 = vmatprep.subr.mxu0 0.0
      %2334 = vmatpush1.msra.mxu0 0.0
      %2335 = vmatprep.subr.mxu0 0.0
      %2336 = vmatpush1.msra.mxu0 0.0
      %2337 = vmatprep.subr.mxu0 0.0
      %2338 = vmatpush1.msra.mxu0 0.0
      %2339 = vmatprep.subr.mxu0 0.0
      %2340 = vmatpush1.msra.mxu0 0.0
      %2341 = vmatprep.mubr.f32.mxu0 0.0
      %v2342 = vand.u32 %v2187, 4294901760
      %2343 = vmatmul.mubr.f32.gmra.mrb[0].mxu0 %v2342
      %v2344 = vpop.f32.mrb[0].mxu0
      %v2345 = vadd.f32 %v2263, %v2344
      %v2346 = vpop.f32.mrb[0].mxu0
      %v2347 = vadd.f32 %v2265, %v2346
      %2348 = vdwg.mxu0
      %v2349 = vand.u32 %v2179, 4294901760
      %v2350 = vsub.f32 %v2179, %v2349
      %2351 = vmatprep.subr.mxu0 %v2350
      %v2352 = vand.u32 %v2178, 4294901760
      %v2353 = vsub.f32 %v2178, %v2352
      %2354 = vmatpush1.msra.mxu0 %v2353
      %2355 = vmatprep.subr.mxu0 0.0
      %2356 = vmatpush1.msra.mxu0 0.0
      %2357 = vmatprep.subr.mxu0 0.0
      %2358 = vmatpush1.msra.mxu0 0.0
      %2359 = vmatprep.subr.mxu0 0.0
      %2360 = vmatpush1.msra.mxu0 0.0
      %2361 = vmatprep.subr.mxu0 0.0
      %2362 = vmatpush1.msra.mxu0 0.0
      %2363 = vmatprep.subr.mxu0 0.0
      %2364 = vmatpush1.msra.mxu0 0.0
      %2365 = vmatprep.subr.mxu0 0.0
      %2366 = vmatpush1.msra.mxu0 0.0
      %2367 = vmatprep.subr.mxu0 0.0
      %2368 = vmatpush1.msra.mxu0 0.0
      %2369 = vmatprep.subr.mxu0 0.0
      %2370 = vmatpush1.msra.mxu0 0.0
      %2371 = vmatprep.subr.mxu0 0.0
      %2372 = vmatpush1.msra.mxu0 0.0
      %2373 = vmatprep.subr.mxu0 0.0
      %2374 = vmatpush1.msra.mxu0 0.0
      %2375 = vmatprep.subr.mxu0 0.0
      %2376 = vmatpush1.msra.mxu0 0.0
      %2377 = vmatprep.subr.mxu0 0.0
      %2378 = vmatpush1.msra.mxu0 0.0
      %2379 = vmatprep.subr.mxu0 0.0
      %2380 = vmatpush1.msra.mxu0 0.0
      %2381 = vmatprep.subr.mxu0 0.0
      %2382 = vmatpush1.msra.mxu0 0.0
      %2383 = vmatprep.subr.mxu0 0.0
      %2384 = vmatpush1.msra.mxu0 0.0
      %2385 = vmatprep.subr.mxu0 0.0
      %2386 = vmatpush1.msra.mxu0 0.0
      %2387 = vmatprep.subr.mxu0 0.0
      %2388 = vmatpush1.msra.mxu0 0.0
      %2389 = vmatprep.subr.mxu0 0.0
      %2390 = vmatpush1.msra.mxu0 0.0
      %2391 = vmatprep.subr.mxu0 0.0
      %2392 = vmatpush1.msra.mxu0 0.0
      %2393 = vmatprep.subr.mxu0 0.0
      %2394 = vmatpush1.msra.mxu0 0.0
      %2395 = vmatprep.subr.mxu0 0.0
      %2396 = vmatpush1.msra.mxu0 0.0
      %2397 = vmatprep.subr.mxu0 0.0
      %2398 = vmatpush1.msra.mxu0 0.0
      %2399 = vmatprep.subr.mxu0 0.0
      %2400 = vmatpush1.msra.mxu0 0.0
      %2401 = vmatprep.subr.mxu0 0.0
      %2402 = vmatpush1.msra.mxu0 0.0
      %2403 = vmatprep.subr.mxu0 0.0
      %2404 = vmatpush1.msra.mxu0 0.0
      %2405 = vmatprep.subr.mxu0 0.0
      %2406 = vmatpush1.msra.mxu0 0.0
      %2407 = vmatprep.subr.mxu0 0.0
      %2408 = vmatpush1.msra.mxu0 0.0
      %2409 = vmatprep.subr.mxu0 0.0
      %2410 = vmatpush1.msra.mxu0 0.0
      %2411 = vmatprep.subr.mxu0 0.0
      %2412 = vmatpush1.msra.mxu0 0.0
      %2413 = vmatprep.subr.mxu0 0.0
      %2414 = vmatpush1.msra.mxu0 0.0
      %2415 = vmatprep.subr.mxu0 0.0
      %2416 = vmatpush1.msra.mxu0 0.0
      %2417 = vmatprep.mubr.f32.mxu0 0.0
      %v2418 = vand.u32 %v2187, 4294901760
      %v2419 = vsub.f32 %v2187, %v2418
      %2420 = vmatmul.mubr.f32.gmra.mrb[0].mxu0 %v2419
      %v2421 = vpop.f32.mrb[0].mxu0
      %v2422 = vadd.f32 %v2345, %v2421
      %v2423 = vpop.f32.mrb[0].mxu0
      %v2424 = vadd.f32 %v2347, %v2423
      %2425 = vdwg.mxu0
      %v2426 = vand.u32 %v2179, 4294901760
      %2427 = vmatprep.subr.mxu0 %v2426
      %v2428 = vand.u32 %v2178, 4294901760
      %2429 = vmatpush1.msra.mxu0 %v2428
      %2430 = vmatprep.subr.mxu0 0.0
      %2431 = vmatpush1.msra.mxu0 0.0
      %2432 = vmatprep.subr.mxu0 0.0
      %2433 = vmatpush1.msra.mxu0 0.0
      %2434 = vmatprep.subr.mxu0 0.0
      %2435 = vmatpush1.msra.mxu0 0.0
      %2436 = vmatprep.subr.mxu0 0.0
      %2437 = vmatpush1.msra.mxu0 0.0
      %2438 = vmatprep.subr.mxu0 0.0
      %2439 = vmatpush1.msra.mxu0 0.0
      %2440 = vmatprep.subr.mxu0 0.0
      %2441 = vmatpush1.msra.mxu0 0.0
      %2442 = vmatprep.subr.mxu0 0.0
      %2443 = vmatpush1.msra.mxu0 0.0
      %2444 = vmatprep.subr.mxu0 0.0
      %2445 = vmatpush1.msra.mxu0 0.0
      %2446 = vmatprep.subr.mxu0 0.0
      %2447 = vmatpush1.msra.mxu0 0.0
      %2448 = vmatprep.subr.mxu0 0.0
      %2449 = vmatpush1.msra.mxu0 0.0
      %2450 = vmatprep.subr.mxu0 0.0
      %2451 = vmatpush1.msra.mxu0 0.0
      %2452 = vmatprep.subr.mxu0 0.0
      %2453 = vmatpush1.msra.mxu0 0.0
      %2454 = vmatprep.subr.mxu0 0.0
      %2455 = vmatpush1.msra.mxu0 0.0
      %2456 = vmatprep.subr.mxu0 0.0
      %2457 = vmatpush1.msra.mxu0 0.0
      %2458 = vmatprep.subr.mxu0 0.0
      %2459 = vmatpush1.msra.mxu0 0.0
      %2460 = vmatprep.subr.mxu0 0.0
      %2461 = vmatpush1.msra.mxu0 0.0
      %2462 = vmatprep.subr.mxu0 0.0
      %2463 = vmatpush1.msra.mxu0 0.0
      %2464 = vmatprep.subr.mxu0 0.0
      %2465 = vmatpush1.msra.mxu0 0.0
      %2466 = vmatprep.subr.mxu0 0.0
      %2467 = vmatpush1.msra.mxu0 0.0
      %2468 = vmatprep.subr.mxu0 0.0
      %2469 = vmatpush1.msra.mxu0 0.0
      %2470 = vmatprep.subr.mxu0 0.0
      %2471 = vmatpush1.msra.mxu0 0.0
      %2472 = vmatprep.subr.mxu0 0.0
      %2473 = vmatpush1.msra.mxu0 0.0
      %2474 = vmatprep.subr.mxu0 0.0
      %2475 = vmatpush1.msra.mxu0 0.0
      %2476 = vmatprep.subr.mxu0 0.0
      %2477 = vmatpush1.msra.mxu0 0.0
      %2478 = vmatprep.subr.mxu0 0.0
      %2479 = vmatpush1.msra.mxu0 0.0
      %2480 = vmatprep.subr.mxu0 0.0
      %2481 = vmatpush1.msra.mxu0 0.0
      %2482 = vmatprep.subr.mxu0 0.0
      %2483 = vmatpush1.msra.mxu0 0.0
      %2484 = vmatprep.subr.mxu0 0.0
      %2485 = vmatpush1.msra.mxu0 0.0
      %2486 = vmatprep.subr.mxu0 0.0
      %2487 = vmatpush1.msra.mxu0 0.0
      %2488 = vmatprep.subr.mxu0 0.0
      %2489 = vmatpush1.msra.mxu0 0.0
      %2490 = vmatprep.subr.mxu0 0.0
      %2491 = vmatpush1.msra.mxu0 0.0
      %2492 = vmatprep.mubr.f32.mxu0 0.0
      %v2493 = vand.u32 %v2187, 4294901760
      %v2494 = vsub.f32 %v2187, %v2493
      %v2495 = vand.u32 %v2494, 4294901760
      %2496 = vmatmul.mubr.f32.gmra.mrb[0].mxu0 %v2495
      %v2497 = vpop.f32.mrb[0].mxu0
      %v2498 = vadd.f32 %v2422, %v2497
      %v2499 = vpop.f32.mrb[0].mxu0
      %v2500 = vadd.f32 %v2424, %v2499
      %2501 = vdwg.mxu0
      %v2502 = vand.u32 %v2179, 4294901760
      %v2503 = vsub.f32 %v2179, %v2502
      %v2504 = vand.u32 %v2503, 4294901760
      %2505 = vmatprep.subr.mxu0 %v2504
      %v2506 = vand.u32 %v2178, 4294901760
      %v2507 = vsub.f32 %v2178, %v2506
      %v2508 = vand.u32 %v2507, 4294901760
      %2509 = vmatpush1.msra.mxu0 %v2508
      %2510 = vmatprep.subr.mxu0 0.0
      %2511 = vmatpush1.msra.mxu0 0.0
      %2512 = vmatprep.subr.mxu0 0.0
      %2513 = vmatpush1.msra.mxu0 0.0
      %2514 = vmatprep.subr.mxu0 0.0
      %2515 = vmatpush1.msra.mxu0 0.0
      %2516 = vmatprep.subr.mxu0 0.0
      %2517 = vmatpush1.msra.mxu0 0.0
      %2518 = vmatprep.subr.mxu0 0.0
      %2519 = vmatpush1.msra.mxu0 0.0
      %2520 = vmatprep.subr.mxu0 0.0
      %2521 = vmatpush1.msra.mxu0 0.0
      %2522 = vmatprep.subr.mxu0 0.0
      %2523 = vmatpush1.msra.mxu0 0.0
      %2524 = vmatprep.subr.mxu0 0.0
      %2525 = vmatpush1.msra.mxu0 0.0
      %2526 = vmatprep.subr.mxu0 0.0
      %2527 = vmatpush1.msra.mxu0 0.0
      %2528 = vmatprep.subr.mxu0 0.0
      %2529 = vmatpush1.msra.mxu0 0.0
      %2530 = vmatprep.subr.mxu0 0.0
      %2531 = vmatpush1.msra.mxu0 0.0
      %2532 = vmatprep.subr.mxu0 0.0
      %2533 = vmatpush1.msra.mxu0 0.0
      %2534 = vmatprep.subr.mxu0 0.0
      %2535 = vmatpush1.msra.mxu0 0.0
      %2536 = vmatprep.subr.mxu0 0.0
      %2537 = vmatpush1.msra.mxu0 0.0
      %2538 = vmatprep.subr.mxu0 0.0
      %2539 = vmatpush1.msra.mxu0 0.0
      %2540 = vmatprep.subr.mxu0 0.0
      %2541 = vmatpush1.msra.mxu0 0.0
      %2542 = vmatprep.subr.mxu0 0.0
      %2543 = vmatpush1.msra.mxu0 0.0
      %2544 = vmatprep.subr.mxu0 0.0
      %2545 = vmatpush1.msra.mxu0 0.0
      %2546 = vmatprep.subr.mxu0 0.0
      %2547 = vmatpush1.msra.mxu0 0.0
      %2548 = vmatprep.subr.mxu0 0.0
      %2549 = vmatpush1.msra.mxu0 0.0
      %2550 = vmatprep.subr.mxu0 0.0
      %2551 = vmatpush1.msra.mxu0 0.0
      %2552 = vmatprep.subr.mxu0 0.0
      %2553 = vmatpush1.msra.mxu0 0.0
      %2554 = vmatprep.subr.mxu0 0.0
      %2555 = vmatpush1.msra.mxu0 0.0
      %2556 = vmatprep.subr.mxu0 0.0
      %2557 = vmatpush1.msra.mxu0 0.0
      %2558 = vmatprep.subr.mxu0 0.0
      %2559 = vmatpush1.msra.mxu0 0.0
      %2560 = vmatprep.subr.mxu0 0.0
      %2561 = vmatpush1.msra.mxu0 0.0
      %2562 = vmatprep.subr.mxu0 0.0
      %2563 = vmatpush1.msra.mxu0 0.0
      %2564 = vmatprep.subr.mxu0 0.0
      %2565 = vmatpush1.msra.mxu0 0.0
      %2566 = vmatprep.subr.mxu0 0.0
      %2567 = vmatpush1.msra.mxu0 0.0
      %2568 = vmatprep.subr.mxu0 0.0
      %2569 = vmatpush1.msra.mxu0 0.0
      %2570 = vmatprep.subr.mxu0 0.0
      %2571 = vmatpush1.msra.mxu0 0.0
      %2572 = vmatprep.mubr.f32.mxu0 0.0
      %v2573 = vand.u32 %v2187, 4294901760
      %2574 = vmatmul.mubr.f32.gmra.mrb[0].mxu0 %v2573
      %v2575 = vpop.f32.mrb[0].mxu0
      %v2576 = vadd.f32 %v2498, %v2575
      %v2577 = vpop.f32.mrb[0].mxu0
      %v2578 = vadd.f32 %v2500, %v2577
      %2579 = vdwg.mxu0
      %v2580 = vand.u32 %v2179, 4294901760
      %2581 = vmatprep.subr.mxu0 %v2580
      %v2582 = vand.u32 %v2178, 4294901760
      %2583 = vmatpush1.msra.mxu0 %v2582
      %2584 = vmatprep.subr.mxu0 0.0
      %2585 = vmatpush1.msra.mxu0 0.0
      %2586 = vmatprep.subr.mxu0 0.0
      %2587 = vmatpush1.msra.mxu0 0.0
      %2588 = vmatprep.subr.mxu0 0.0
      %2589 = vmatpush1.msra.mxu0 0.0
      %2590 = vmatprep.subr.mxu0 0.0
      %2591 = vmatpush1.msra.mxu0 0.0
      %2592 = vmatprep.subr.mxu0 0.0
      %2593 = vmatpush1.msra.mxu0 0.0
      %2594 = vmatprep.subr.mxu0 0.0
      %2595 = vmatpush1.msra.mxu0 0.0
      %2596 = vmatprep.subr.mxu0 0.0
      %2597 = vmatpush1.msra.mxu0 0.0
      %2598 = vmatprep.subr.mxu0 0.0
      %2599 = vmatpush1.msra.mxu0 0.0
      %2600 = vmatprep.subr.mxu0 0.0
      %2601 = vmatpush1.msra.mxu0 0.0
      %2602 = vmatprep.subr.mxu0 0.0
      %2603 = vmatpush1.msra.mxu0 0.0
      %2604 = vmatprep.subr.mxu0 0.0
      %2605 = vmatpush1.msra.mxu0 0.0
      %2606 = vmatprep.subr.mxu0 0.0
      %2607 = vmatpush1.msra.mxu0 0.0
      %2608 = vmatprep.subr.mxu0 0.0
      %2609 = vmatpush1.msra.mxu0 0.0
      %2610 = vmatprep.subr.mxu0 0.0
      %2611 = vmatpush1.msra.mxu0 0.0
      %2612 = vmatprep.subr.mxu0 0.0
      %2613 = vmatpush1.msra.mxu0 0.0
      %2614 = vmatprep.subr.mxu0 0.0
      %2615 = vmatpush1.msra.mxu0 0.0
      %2616 = vmatprep.subr.mxu0 0.0
      %2617 = vmatpush1.msra.mxu0 0.0
      %2618 = vmatprep.subr.mxu0 0.0
      %2619 = vmatpush1.msra.mxu0 0.0
      %2620 = vmatprep.subr.mxu0 0.0
      %2621 = vmatpush1.msra.mxu0 0.0
      %2622 = vmatprep.subr.mxu0 0.0
      %2623 = vmatpush1.msra.mxu0 0.0
      %2624 = vmatprep.subr.mxu0 0.0
      %2625 = vmatpush1.msra.mxu0 0.0
      %2626 = vmatprep.subr.mxu0 0.0
      %2627 = vmatpush1.msra.mxu0 0.0
      %2628 = vmatprep.subr.mxu0 0.0
      %2629 = vmatpush1.msra.mxu0 0.0
      %2630 = vmatprep.subr.mxu0 0.0
      %2631 = vmatpush1.msra.mxu0 0.0
      %2632 = vmatprep.subr.mxu0 0.0
      %2633 = vmatpush1.msra.mxu0 0.0
      %2634 = vmatprep.subr.mxu0 0.0
      %2635 = vmatpush1.msra.mxu0 0.0
      %2636 = vmatprep.subr.mxu0 0.0
      %2637 = vmatpush1.msra.mxu0 0.0
      %2638 = vmatprep.subr.mxu0 0.0
      %2639 = vmatpush1.msra.mxu0 0.0
      %2640 = vmatprep.subr.mxu0 0.0
      %2641 = vmatpush1.msra.mxu0 0.0
      %2642 = vmatprep.subr.mxu0 0.0
      %2643 = vmatpush1.msra.mxu0 0.0
      %2644 = vmatprep.subr.mxu0 0.0
      %2645 = vmatpush1.msra.mxu0 0.0
      %2646 = vmatprep.mubr.f32.mxu0 0.0
      %v2647 = vand.u32 %v2187, 4294901760
      %2648 = vmatmul.mubr.f32.gmra.mrb[0].mxu0 %v2647
      %v2649 = vpop.f32.mrb[0].mxu0
      %v2650 = vadd.f32 %v2576, %v2649
      %v2651 = vpop.f32.mrb[0].mxu0
      %v2652 = vadd.f32 %v2578, %v2651
      %2653 = vdwg.mxu0
      %v2656 = vcombine.low %v2650, %v2652
      %2658 = vst [vmem:[%s145] sm:$0xff] %v2656
      %s2659 = smul.u32 2, %s13
      %p2660 = scmp.lt.s32.totalorder %s2659, 3
      %s2661 = scalar_select %p2660, %s2659, 3
      %s2662 = smul.addr %s2661, 4
      %s2663 = scalar_lea.vmem %s2, %s2662
      // Predicated region
      $region29: #{mlp_forward.1} parent=27 // pred_check
        %p2664 = pneg %p78
      $region30: #{mlp_forward.1} parent=27 // pred_check_branch
        %2666 = sbr.rel (%p2664) target = $region32
      $region31: #{mlp_forward.1} parent=27 // pred_region
        %s2667 = smul.u32 2, %s13
      $region32: #{mlp_forward.1} parent=27 // pred_fallthru
        _
    $region28: #{mlp_forward.1} parent=5 // pred_fallthru
      _
    %p2668 = scmp.le.s32.totalorder 2, %s8
    // Predicated region
    $region33: #{mlp_forward.1} parent=5 // pred_check
      %p2669 = pneg %p2668
    $region34: #{mlp_forward.1} parent=5 // pred_check_branch
      %2671 = sbr.rel (%p2669) target = $region36
    $region35: #{mlp_forward.1} parent=5 // pred_region
      %s2672 = ssub.s32 %s8, 2
      // Predicated region
      $region37: #{mlp_forward.1} parent=35 // pred_check
        %p2673 = pneg %p84
      $region38: #{mlp_forward.1} parent=35 // pred_check_branch
        %2675 = sbr.rel (%p2673) target = $region40
      $region39: #{mlp_forward.1} parent=35 // pred_region
        %s2676 = smul.u32 2, %s14
        %p2677 = scmp.lt.s32.totalorder %s2676, 3
        %s2678 = scalar_select %p2677, %s2676, 3
        %s2679 = smul.addr %s2678, 4
        %s2680 = scalar_lea.vmem %s2, %s2679
      $region40: #{mlp_forward.1} parent=35 // pred_fallthru
        _
    $region36: #{mlp_forward.1} parent=5 // pred_fallthru
      _
  $region6: #{mlp_forward.1} parent=0 // loop_footer
    %s12 = sadd.s32 1, %s8
  $region7: #{mlp_forward.1} parent=0 // loop_footer_branch
    %7 = sbr.rel target = $region3
  $region8: #{mlp_forward.1} parent=0 // loop_exit
    _

</llo_original>
